<compile_context>
chip_gen: v7x
topology: tpu7x:2x2x1
jax: 0.10.0
libtpu: 0.0.40
codegen_flags: <defaults>
</compile_context>

<pallas_src>
import functools
import math

import jax
import jax.numpy as jnp
from jax import lax
from jax.experimental import pallas as pl
from jax.experimental.pallas import tpu as pltpu

INPUT_SIZE = 5
HIDDEN_SIZE = 50
OUT_SIZE = 5

DIN_P = 8      # input features padded to 8 (sublane multiple for the K dim)
HP = 128       # hidden padded to one full vreg lane width per gate
G4 = 4 * HP    # 4 gates, each 128-lane aligned
DOUT_P = 128   # output features padded to lane width (sliced off in wrapper)


def _airmodel_kernel(x_ref, w_ih_ref, w_hh_ref, b_ref, w_lin_ref, b_lin_ref,
                     y_ref, gx_ref, hist_ref, *, T, BP, HP):
    """Fused LSTM + Linear.

    x_ref:     (T*BP, DIN_P)  time-major, batch & feature zero-padded
    w_ih_ref:  (DIN_P, 4*HP)  gate-padded, transposed weight_ih_l0
    w_hh_ref:  (HP, 4*HP)     gate-padded, transposed weight_hh_l0
    b_ref:     (1, 4*HP)      gate-padded (bias_ih + bias_hh)
    w_lin_ref: (HP, DOUT_P)   padded, transposed linear weight
    b_lin_ref: (1, DOUT_P)    padded linear bias
    y_ref:     (T*BP, DOUT_P) output (wrapper strips padding)
    gx_ref:    (T*BP, 4*HP)   scratch: precomputed input-side gates
    hist_ref:  (T*BP, HP)     scratch: per-step hidden state history
    """
    # --- 1) hoisted input projection + bias: one matmul for all timesteps ---
    gx_ref[...] = (
        jnp.dot(x_ref[...], w_ih_ref[...], preferred_element_type=jnp.float32)
        + b_ref[...]
    )

    # --- 2) serial recurrence; h/c stay in vregs (loop carry) ---
    def step(t, carry):
        h, c = carry
        if isinstance(t, int):
            row = t * BP                      # static slice when unrolled
        else:
            row = pl.multiple_of(t * BP, BP)  # aligned dynamic slice
        gates = gx_ref[pl.ds(row, BP), :] + jnp.dot(
            h, w_hh_ref[...], preferred_element_type=jnp.float32)
        # gate order (i, f, g, o), each gate at a 128-lane boundary
        i = jax.nn.sigmoid(gates[:, 0 * HP:1 * HP])
        f = jax.nn.sigmoid(gates[:, 1 * HP:2 * HP])
        g = jnp.tanh(gates[:, 2 * HP:3 * HP])
        o = jax.nn.sigmoid(gates[:, 3 * HP:4 * HP])
        c = f * c + i * g
        h = o * jnp.tanh(c)
        hist_ref[pl.ds(row, BP), :] = h
        return h, c

    h0 = jnp.zeros((BP, HP), jnp.float32)   # PyTorch default zero init
    c0 = jnp.zeros((BP, HP), jnp.float32)
    if T <= 32:
        carry = (h0, c0)
        for t in range(T):                  # full static unroll, small T
            carry = step(t, carry)
    else:
        lax.fori_loop(0, T, step, (h0, c0), unroll=8)

    # --- 3) hoisted output Linear: one matmul over all timesteps ---
    y_ref[...] = (
        jnp.dot(hist_ref[...], w_lin_ref[...], preferred_element_type=jnp.float32)
        + b_lin_ref[...]
    ).astype(y_ref.dtype)


def init_params(key):
    """Deterministic init mimicking PyTorch's uniform(-1/sqrt(H), 1/sqrt(H))."""
    k1, k2, k3, k4, k5, k6 = jax.random.split(key, 6)
    k = 1.0 / math.sqrt(HIDDEN_SIZE)
    return {
        "w_ih": jax.random.uniform(k1, (4 * HIDDEN_SIZE, INPUT_SIZE), jnp.float32, -k, k),
        "w_hh": jax.random.uniform(k2, (4 * HIDDEN_SIZE, HIDDEN_SIZE), jnp.float32, -k, k),
        "b_ih": jax.random.uniform(k3, (4 * HIDDEN_SIZE,), jnp.float32, -k, k),
        "b_hh": jax.random.uniform(k4, (4 * HIDDEN_SIZE,), jnp.float32, -k, k),
        "w_lin": jax.random.uniform(k5, (OUT_SIZE, HIDDEN_SIZE), jnp.float32, -k, k),
        "b_lin": jax.random.uniform(k6, (OUT_SIZE,), jnp.float32, -k, k),
    }


def _round_up(n, m):
    return (n + m - 1) // m * m


def _pad_gate_cols(w):
    """(rows, 4*H) -> (rows, 4*HP): zero-pad each gate block from 50 to 128 lanes."""
    r = w.shape[0]
    w4 = w.reshape(r, 4, HIDDEN_SIZE)
    return jnp.pad(w4, ((0, 0), (0, 0), (0, HP - HIDDEN_SIZE))).reshape(r, G4)


@jax.jit
def air_model_forward(x, params):
    """x: (B, T, INPUT_SIZE) float32 (batch_first, like the PyTorch module)."""
    B, T, _ = x.shape
    BP = _round_up(max(B, 8), 8)

    # --- weight prep (tiny tensors, done once per call) ---
    w_ih_p = jnp.pad(_pad_gate_cols(params["w_ih"].T),
                     ((0, DIN_P - INPUT_SIZE), (0, 0)))            # (8, 512)
    w_hh_p = jnp.pad(_pad_gate_cols(params["w_hh"].T),
                     ((0, HP - HIDDEN_SIZE), (0, 0)))              # (128, 512)
    b_p = _pad_gate_cols(
        (params["b_ih"] + params["b_hh"]).reshape(1, 4 * HIDDEN_SIZE))  # (1, 512)
    w_lin_p = jnp.pad(params["w_lin"].T,
                      ((0, HP - HIDDEN_SIZE), (0, DOUT_P - OUT_SIZE)))  # (128, 128)
    b_lin_p = jnp.pad(params["b_lin"].reshape(1, OUT_SIZE),
                      ((0, 0), (0, DOUT_P - OUT_SIZE)))            # (1, 128)

    # --- input: time-major, batch padded to BP, features padded to 8 ---
    x_tm = jnp.transpose(x, (1, 0, 2))                             # (T, B, 5)
    x_p = jnp.pad(x_tm, ((0, 0), (0, BP - B), (0, DIN_P - INPUT_SIZE)))
    x2d = x_p.reshape(T * BP, DIN_P).astype(jnp.float32)

    kernel = functools.partial(_airmodel_kernel, T=T, BP=BP, HP=HP)
    y2d = pl.pallas_call(
        kernel,
        out_shape=jax.ShapeDtypeStruct((T * BP, DOUT_P), jnp.float32),
        in_specs=[pl.BlockSpec(memory_space=pltpu.MemorySpace.VMEM)] * 6,
        out_specs=pl.BlockSpec(memory_space=pltpu.MemorySpace.VMEM),
        scratch_shapes=[
            pltpu.VMEM((T * BP, G4), jnp.float32),   # precomputed x-side gates
            pltpu.VMEM((T * BP, HP), jnp.float32),   # hidden-state history
        ],
    )(x2d, w_ih_p, w_hh_p, b_p, w_lin_p, b_lin_p)

    y = y2d.reshape(T, BP, DOUT_P)[:, :B, :OUT_SIZE]               # strip padding
    return jnp.transpose(y, (1, 0, 2))                             # (B, T, 5)


def reference_forward(x, params):
    """Pure-JAX reference matching torch nn.LSTM + nn.Linear semantics."""
    B, T, _ = x.shape
    H = HIDDEN_SIZE
    w_ih_t = params["w_ih"].T
    w_hh_t = params["w_hh"].T
    b = params["b_ih"] + params["b_hh"]
    h = jnp.zeros((B, H), jnp.float32)
    c = jnp.zeros((B, H), jnp.float32)
    hs = []
    for t in range(T):
        gates = x[:, t, :] @ w_ih_t + h @ w_hh_t + b
        i = jax.nn.sigmoid(gates[:, 0:H])
        f = jax.nn.sigmoid(gates[:, H:2 * H])
        g = jnp.tanh(gates[:, 2 * H:3 * H])
        o = jax.nn.sigmoid(gates[:, 3 * H:4 * H])
        c = f * c + i * g
        h = o * jnp.tanh(c)
        hs.append(h)
    hs = jnp.stack(hs, axis=1)                                     # (B, T, H)
    return hs @ params["w_lin"].T + params["b_lin"]


if __name__ == "__main__":
    key = jax.random.PRNGKey(0)
    pkey, xkey = jax.random.split(key)
    params = init_params(pkey)

    B, T = 2, 8
    x = jax.random.normal(xkey, (B, T, INPUT_SIZE), dtype=jnp.float32)

    y = air_model_forward(x, params)
    y = jax.block_until_ready(y)

    y_ref = reference_forward(x, params)
    assert y.shape == (B, T, OUT_SIZE)
    assert jnp.allclose(y, y_ref, atol=1e-4, rtol=1e-4)

    print("KERNEL_OK")
</pallas_src>

<mosaic_0001>
module attributes {stable_mosaic.version = 11 : i64} {
  func.func @_airmodel_kernel(%arg0: memref<64x8xf32, #tpu.memory_space<vmem>>, %arg1: memref<8x512xf32, #tpu.memory_space<vmem>>, %arg2: memref<128x512xf32, #tpu.memory_space<vmem>>, %arg3: memref<1x512xf32, #tpu.memory_space<vmem>>, %arg4: memref<128x128xf32, #tpu.memory_space<vmem>>, %arg5: memref<1x128xf32, #tpu.memory_space<vmem>>, %arg6: memref<64x128xf32, #tpu.memory_space<vmem>>, %arg7: memref<64x512xf32, #tpu.memory_space<vmem>>, %arg8: memref<64x128xf32, #tpu.memory_space<vmem>>) attributes {dimension_semantics = [], scalar_prefetch = 0 : i64, scratch_operands = 2 : i64, tpu.core_type = #tpu.core_type<tc>} {
    %c0 = arith.constant 0 : index
    %c0_0 = arith.constant 0 : index
    %0 = vector.load %arg0[%c0, %c0_0] : memref<64x8xf32, #tpu.memory_space<vmem>>, vector<64x8xf32>
    %c0_1 = arith.constant 0 : index
    %c0_2 = arith.constant 0 : index
    %1 = vector.load %arg1[%c0_1, %c0_2] : memref<8x512xf32, #tpu.memory_space<vmem>>, vector<8x512xf32>
    %cst = arith.constant dense<0.000000e+00> : vector<64x512xf32>
    %2 = tpu.matmul %0, %1, %cst {dimension_numbers = #tpu.dot_dimension_numbers<[1], [0], [0], [1], [0, 0, 1, 1], [], []>} : vector<64x8xf32>, vector<8x512xf32>, vector<64x512xf32> -> vector<64x512xf32>
    %c0_3 = arith.constant 0 : index
    %c0_4 = arith.constant 0 : index
    %3 = vector.load %arg3[%c0_3, %c0_4] : memref<1x512xf32, #tpu.memory_space<vmem>>, vector<1x512xf32>
    %4 = vector.broadcast %3 : vector<1x512xf32> to vector<64x512xf32>
    %5 = arith.addf %2, %4 : vector<64x512xf32>
    %c0_5 = arith.constant 0 : index
    %c0_6 = arith.constant 0 : index
    %6 = vector.load %arg7[%c0_5, %c0_6] : memref<64x512xf32, #tpu.memory_space<vmem>>, vector<64x512xf32>
    tpu.vector_store %arg7[%c0_5, %c0_6], %5 {strides = array<i32>} : memref<64x512xf32, #tpu.memory_space<vmem>>, vector<64x512xf32>,
    %cst_7 = arith.constant 0.000000e+00 : f32
    %7 = vector.broadcast %cst_7 : f32 to vector<8x128xf32>
    %cst_8 = arith.constant 0.000000e+00 : f32
    %8 = vector.broadcast %cst_8 : f32 to vector<8x128xf32>
    %c0_9 = arith.constant 0 : index
    %c0_10 = arith.constant 0 : index
    %9 = vector.load %arg7[%c0_9, %c0_10] : memref<64x512xf32, #tpu.memory_space<vmem>>, vector<8x512xf32>
    %c0_11 = arith.constant 0 : index
    %c0_12 = arith.constant 0 : index
    %10 = vector.load %arg2[%c0_11, %c0_12] : memref<128x512xf32, #tpu.memory_space<vmem>>, vector<128x512xf32>
    %cst_13 = arith.constant dense<0.000000e+00> : vector<8x512xf32>
    %11 = tpu.matmul %7, %10, %cst_13 {dimension_numbers = #tpu.dot_dimension_numbers<[1], [0], [0], [1], [0, 0, 1, 1], [], []>} : vector<8x128xf32>, vector<128x512xf32>, vector<8x512xf32> -> vector<8x512xf32>
    %12 = arith.addf %9, %11 : vector<8x512xf32>
    %13 = vector.extract_strided_slice %12 {offsets = [0, 0], sizes = [8, 128], strides = [1, 1]} : vector<8x512xf32> to vector<8x128xf32>
    %14 = arith.negf %13 : vector<8x128xf32>
    %15 = math.exp %14 : vector<8x128xf32>
    %cst_14 = arith.constant 1.000000e+00 : f32
    %16 = vector.broadcast %cst_14 : f32 to vector<8x128xf32>
    %17 = arith.addf %16, %15 : vector<8x128xf32>
    %18 = arith.divf %16, %17 : vector<8x128xf32>
    %19 = vector.extract_strided_slice %12 {offsets = [0, 128], sizes = [8, 128], strides = [1, 1]} : vector<8x512xf32> to vector<8x128xf32>
    %20 = arith.negf %19 : vector<8x128xf32>
    %21 = math.exp %20 : vector<8x128xf32>
    %cst_15 = arith.constant 1.000000e+00 : f32
    %22 = vector.broadcast %cst_15 : f32 to vector<8x128xf32>
    %23 = arith.addf %22, %21 : vector<8x128xf32>
    %24 = arith.divf %22, %23 : vector<8x128xf32>
    %25 = vector.extract_strided_slice %12 {offsets = [0, 256], sizes = [8, 128], strides = [1, 1]} : vector<8x512xf32> to vector<8x128xf32>
    %26 = math.tanh %25 : vector<8x128xf32>
    %27 = vector.extract_strided_slice %12 {offsets = [0, 384], sizes = [8, 128], strides = [1, 1]} : vector<8x512xf32> to vector<8x128xf32>
    %28 = arith.negf %27 : vector<8x128xf32>
    %29 = math.exp %28 : vector<8x128xf32>
    %cst_16 = arith.constant 1.000000e+00 : f32
    %30 = vector.broadcast %cst_16 : f32 to vector<8x128xf32>
    %31 = arith.addf %30, %29 : vector<8x128xf32>
    %32 = arith.divf %30, %31 : vector<8x128xf32>
    %33 = arith.mulf %24, %8 : vector<8x128xf32>
    %34 = arith.mulf %18, %26 : vector<8x128xf32>
    %35 = arith.addf %33, %34 : vector<8x128xf32>
    %36 = math.tanh %35 : vector<8x128xf32>
    %37 = arith.mulf %32, %36 : vector<8x128xf32>
    %c0_17 = arith.constant 0 : index
    %c0_18 = arith.constant 0 : index
    %38 = vector.load %arg8[%c0_17, %c0_18] : memref<64x128xf32, #tpu.memory_space<vmem>>, vector<8x128xf32>
    tpu.vector_store %arg8[%c0_17, %c0_18], %37 {strides = array<i32>} : memref<64x128xf32, #tpu.memory_space<vmem>>, vector<8x128xf32>,
    %c8 = arith.constant 8 : index
    %c0_19 = arith.constant 0 : index
    %39 = vector.load %arg7[%c8, %c0_19] : memref<64x512xf32, #tpu.memory_space<vmem>>, vector<8x512xf32>
    %c0_20 = arith.constant 0 : index
    %c0_21 = arith.constant 0 : index
    %40 = vector.load %arg2[%c0_20, %c0_21] : memref<128x512xf32, #tpu.memory_space<vmem>>, vector<128x512xf32>
    %cst_22 = arith.constant dense<0.000000e+00> : vector<8x512xf32>
    %41 = tpu.matmul %37, %40, %cst_22 {dimension_numbers = #tpu.dot_dimension_numbers<[1], [0], [0], [1], [0, 0, 1, 1], [], []>} : vector<8x128xf32>, vector<128x512xf32>, vector<8x512xf32> -> vector<8x512xf32>
    %42 = arith.addf %39, %41 : vector<8x512xf32>
    %43 = vector.extract_strided_slice %42 {offsets = [0, 0], sizes = [8, 128], strides = [1, 1]} : vector<8x512xf32> to vector<8x128xf32>
    %44 = arith.negf %43 : vector<8x128xf32>
    %45 = math.exp %44 : vector<8x128xf32>
    %cst_23 = arith.constant 1.000000e+00 : f32
    %46 = vector.broadcast %cst_23 : f32 to vector<8x128xf32>
    %47 = arith.addf %46, %45 : vector<8x128xf32>
    %48 = arith.divf %46, %47 : vector<8x128xf32>
    %49 = vector.extract_strided_slice %42 {offsets = [0, 128], sizes = [8, 128], strides = [1, 1]} : vector<8x512xf32> to vector<8x128xf32>
    %50 = arith.negf %49 : vector<8x128xf32>
    %51 = math.exp %50 : vector<8x128xf32>
    %cst_24 = arith.constant 1.000000e+00 : f32
    %52 = vector.broadcast %cst_24 : f32 to vector<8x128xf32>
    %53 = arith.addf %52, %51 : vector<8x128xf32>
    %54 = arith.divf %52, %53 : vector<8x128xf32>
    %55 = vector.extract_strided_slice %42 {offsets = [0, 256], sizes = [8, 128], strides = [1, 1]} : vector<8x512xf32> to vector<8x128xf32>
    %56 = math.tanh %55 : vector<8x128xf32>
    %57 = vector.extract_strided_slice %42 {offsets = [0, 384], sizes = [8, 128], strides = [1, 1]} : vector<8x512xf32> to vector<8x128xf32>
    %58 = arith.negf %57 : vector<8x128xf32>
    %59 = math.exp %58 : vector<8x128xf32>
    %cst_25 = arith.constant 1.000000e+00 : f32
    %60 = vector.broadcast %cst_25 : f32 to vector<8x128xf32>
    %61 = arith.addf %60, %59 : vector<8x128xf32>
    %62 = arith.divf %60, %61 : vector<8x128xf32>
    %63 = arith.mulf %54, %35 : vector<8x128xf32>
    %64 = arith.mulf %48, %56 : vector<8x128xf32>
    %65 = arith.addf %63, %64 : vector<8x128xf32>
    %66 = math.tanh %65 : vector<8x128xf32>
    %67 = arith.mulf %62, %66 : vector<8x128xf32>
    %c8_26 = arith.constant 8 : index
    %c0_27 = arith.constant 0 : index
    %68 = vector.load %arg8[%c8_26, %c0_27] : memref<64x128xf32, #tpu.memory_space<vmem>>, vector<8x128xf32>
    tpu.vector_store %arg8[%c8_26, %c0_27], %67 {strides = array<i32>} : memref<64x128xf32, #tpu.memory_space<vmem>>, vector<8x128xf32>,
    %c16 = arith.constant 16 : index
    %c0_28 = arith.constant 0 : index
    %69 = vector.load %arg7[%c16, %c0_28] : memref<64x512xf32, #tpu.memory_space<vmem>>, vector<8x512xf32>
    %c0_29 = arith.constant 0 : index
    %c0_30 = arith.constant 0 : index
    %70 = vector.load %arg2[%c0_29, %c0_30] : memref<128x512xf32, #tpu.memory_space<vmem>>, vector<128x512xf32>
    %cst_31 = arith.constant dense<0.000000e+00> : vector<8x512xf32>
    %71 = tpu.matmul %67, %70, %cst_31 {dimension_numbers = #tpu.dot_dimension_numbers<[1], [0], [0], [1], [0, 0, 1, 1], [], []>} : vector<8x128xf32>, vector<128x512xf32>, vector<8x512xf32> -> vector<8x512xf32>
    %72 = arith.addf %69, %71 : vector<8x512xf32>
    %73 = vector.extract_strided_slice %72 {offsets = [0, 0], sizes = [8, 128], strides = [1, 1]} : vector<8x512xf32> to vector<8x128xf32>
    %74 = arith.negf %73 : vector<8x128xf32>
    %75 = math.exp %74 : vector<8x128xf32>
    %cst_32 = arith.constant 1.000000e+00 : f32
    %76 = vector.broadcast %cst_32 : f32 to vector<8x128xf32>
    %77 = arith.addf %76, %75 : vector<8x128xf32>
    %78 = arith.divf %76, %77 : vector<8x128xf32>
    %79 = vector.extract_strided_slice %72 {offsets = [0, 128], sizes = [8, 128], strides = [1, 1]} : vector<8x512xf32> to vector<8x128xf32>
    %80 = arith.negf %79 : vector<8x128xf32>
    %81 = math.exp %80 : vector<8x128xf32>
    %cst_33 = arith.constant 1.000000e+00 : f32
    %82 = vector.broadcast %cst_33 : f32 to vector<8x128xf32>
    %83 = arith.addf %82, %81 : vector<8x128xf32>
    %84 = arith.divf %82, %83 : vector<8x128xf32>
    %85 = vector.extract_strided_slice %72 {offsets = [0, 256], sizes = [8, 128], strides = [1, 1]} : vector<8x512xf32> to vector<8x128xf32>
    %86 = math.tanh %85 : vector<8x128xf32>
    %87 = vector.extract_strided_slice %72 {offsets = [0, 384], sizes = [8, 128], strides = [1, 1]} : vector<8x512xf32> to vector<8x128xf32>
    %88 = arith.negf %87 : vector<8x128xf32>
    %89 = math.exp %88 : vector<8x128xf32>
    %cst_34 = arith.constant 1.000000e+00 : f32
    %90 = vector.broadcast %cst_34 : f32 to vector<8x128xf32>
    %91 = arith.addf %90, %89 : vector<8x128xf32>
    %92 = arith.divf %90, %91 : vector<8x128xf32>
    %93 = arith.mulf %84, %65 : vector<8x128xf32>
    %94 = arith.mulf %78, %86 : vector<8x128xf32>
    %95 = arith.addf %93, %94 : vector<8x128xf32>
    %96 = math.tanh %95 : vector<8x128xf32>
    %97 = arith.mulf %92, %96 : vector<8x128xf32>
    %c16_35 = arith.constant 16 : index
    %c0_36 = arith.constant 0 : index
    %98 = vector.load %arg8[%c16_35, %c0_36] : memref<64x128xf32, #tpu.memory_space<vmem>>, vector<8x128xf32>
    tpu.vector_store %arg8[%c16_35, %c0_36], %97 {strides = array<i32>} : memref<64x128xf32, #tpu.memory_space<vmem>>, vector<8x128xf32>,
    %c24 = arith.constant 24 : index
    %c0_37 = arith.constant 0 : index
    %99 = vector.load %arg7[%c24, %c0_37] : memref<64x512xf32, #tpu.memory_space<vmem>>, vector<8x512xf32>
    %c0_38 = arith.constant 0 : index
    %c0_39 = arith.constant 0 : index
    %100 = vector.load %arg2[%c0_38, %c0_39] : memref<128x512xf32, #tpu.memory_space<vmem>>, vector<128x512xf32>
    %cst_40 = arith.constant dense<0.000000e+00> : vector<8x512xf32>
    %101 = tpu.matmul %97, %100, %cst_40 {dimension_numbers = #tpu.dot_dimension_numbers<[1], [0], [0], [1], [0, 0, 1, 1], [], []>} : vector<8x128xf32>, vector<128x512xf32>, vector<8x512xf32> -> vector<8x512xf32>
    %102 = arith.addf %99, %101 : vector<8x512xf32>
    %103 = vector.extract_strided_slice %102 {offsets = [0, 0], sizes = [8, 128], strides = [1, 1]} : vector<8x512xf32> to vector<8x128xf32>
    %104 = arith.negf %103 : vector<8x128xf32>
    %105 = math.exp %104 : vector<8x128xf32>
    %cst_41 = arith.constant 1.000000e+00 : f32
    %106 = vector.broadcast %cst_41 : f32 to vector<8x128xf32>
    %107 = arith.addf %106, %105 : vector<8x128xf32>
    %108 = arith.divf %106, %107 : vector<8x128xf32>
    %109 = vector.extract_strided_slice %102 {offsets = [0, 128], sizes = [8, 128], strides = [1, 1]} : vector<8x512xf32> to vector<8x128xf32>
    %110 = arith.negf %109 : vector<8x128xf32>
    %111 = math.exp %110 : vector<8x128xf32>
    %cst_42 = arith.constant 1.000000e+00 : f32
    %112 = vector.broadcast %cst_42 : f32 to vector<8x128xf32>
    %113 = arith.addf %112, %111 : vector<8x128xf32>
    %114 = arith.divf %112, %113 : vector<8x128xf32>
    %115 = vector.extract_strided_slice %102 {offsets = [0, 256], sizes = [8, 128], strides = [1, 1]} : vector<8x512xf32> to vector<8x128xf32>
    %116 = math.tanh %115 : vector<8x128xf32>
    %117 = vector.extract_strided_slice %102 {offsets = [0, 384], sizes = [8, 128], strides = [1, 1]} : vector<8x512xf32> to vector<8x128xf32>
    %118 = arith.negf %117 : vector<8x128xf32>
    %119 = math.exp %118 : vector<8x128xf32>
    %cst_43 = arith.constant 1.000000e+00 : f32
    %120 = vector.broadcast %cst_43 : f32 to vector<8x128xf32>
    %121 = arith.addf %120, %119 : vector<8x128xf32>
    %122 = arith.divf %120, %121 : vector<8x128xf32>
    %123 = arith.mulf %114, %95 : vector<8x128xf32>
    %124 = arith.mulf %108, %116 : vector<8x128xf32>
    %125 = arith.addf %123, %124 : vector<8x128xf32>
    %126 = math.tanh %125 : vector<8x128xf32>
    %127 = arith.mulf %122, %126 : vector<8x128xf32>
    %c24_44 = arith.constant 24 : index
    %c0_45 = arith.constant 0 : index
    %128 = vector.load %arg8[%c24_44, %c0_45] : memref<64x128xf32, #tpu.memory_space<vmem>>, vector<8x128xf32>
    tpu.vector_store %arg8[%c24_44, %c0_45], %127 {strides = array<i32>} : memref<64x128xf32, #tpu.memory_space<vmem>>, vector<8x128xf32>,
    %c32 = arith.constant 32 : index
    %c0_46 = arith.constant 0 : index
    %129 = vector.load %arg7[%c32, %c0_46] : memref<64x512xf32, #tpu.memory_space<vmem>>, vector<8x512xf32>
    %c0_47 = arith.constant 0 : index
    %c0_48 = arith.constant 0 : index
    %130 = vector.load %arg2[%c0_47, %c0_48] : memref<128x512xf32, #tpu.memory_space<vmem>>, vector<128x512xf32>
    %cst_49 = arith.constant dense<0.000000e+00> : vector<8x512xf32>
    %131 = tpu.matmul %127, %130, %cst_49 {dimension_numbers = #tpu.dot_dimension_numbers<[1], [0], [0], [1], [0, 0, 1, 1], [], []>} : vector<8x128xf32>, vector<128x512xf32>, vector<8x512xf32> -> vector<8x512xf32>
    %132 = arith.addf %129, %131 : vector<8x512xf32>
    %133 = vector.extract_strided_slice %132 {offsets = [0, 0], sizes = [8, 128], strides = [1, 1]} : vector<8x512xf32> to vector<8x128xf32>
    %134 = arith.negf %133 : vector<8x128xf32>
    %135 = math.exp %134 : vector<8x128xf32>
    %cst_50 = arith.constant 1.000000e+00 : f32
    %136 = vector.broadcast %cst_50 : f32 to vector<8x128xf32>
    %137 = arith.addf %136, %135 : vector<8x128xf32>
    %138 = arith.divf %136, %137 : vector<8x128xf32>
    %139 = vector.extract_strided_slice %132 {offsets = [0, 128], sizes = [8, 128], strides = [1, 1]} : vector<8x512xf32> to vector<8x128xf32>
    %140 = arith.negf %139 : vector<8x128xf32>
    %141 = math.exp %140 : vector<8x128xf32>
    %cst_51 = arith.constant 1.000000e+00 : f32
    %142 = vector.broadcast %cst_51 : f32 to vector<8x128xf32>
    %143 = arith.addf %142, %141 : vector<8x128xf32>
    %144 = arith.divf %142, %143 : vector<8x128xf32>
    %145 = vector.extract_strided_slice %132 {offsets = [0, 256], sizes = [8, 128], strides = [1, 1]} : vector<8x512xf32> to vector<8x128xf32>
    %146 = math.tanh %145 : vector<8x128xf32>
    %147 = vector.extract_strided_slice %132 {offsets = [0, 384], sizes = [8, 128], strides = [1, 1]} : vector<8x512xf32> to vector<8x128xf32>
    %148 = arith.negf %147 : vector<8x128xf32>
    %149 = math.exp %148 : vector<8x128xf32>
    %cst_52 = arith.constant 1.000000e+00 : f32
    %150 = vector.broadcast %cst_52 : f32 to vector<8x128xf32>
    %151 = arith.addf %150, %149 : vector<8x128xf32>
    %152 = arith.divf %150, %151 : vector<8x128xf32>
    %153 = arith.mulf %144, %125 : vector<8x128xf32>
    %154 = arith.mulf %138, %146 : vector<8x128xf32>
    %155 = arith.addf %153, %154 : vector<8x128xf32>
    %156 = math.tanh %155 : vector<8x128xf32>
    %157 = arith.mulf %152, %156 : vector<8x128xf32>
    %c32_53 = arith.constant 32 : index
    %c0_54 = arith.constant 0 : index
    %158 = vector.load %arg8[%c32_53, %c0_54] : memref<64x128xf32, #tpu.memory_space<vmem>>, vector<8x128xf32>
    tpu.vector_store %arg8[%c32_53, %c0_54], %157 {strides = array<i32>} : memref<64x128xf32, #tpu.memory_space<vmem>>, vector<8x128xf32>,
    %c40 = arith.constant 40 : index
    %c0_55 = arith.constant 0 : index
    %159 = vector.load %arg7[%c40, %c0_55] : memref<64x512xf32, #tpu.memory_space<vmem>>, vector<8x512xf32>
    %c0_56 = arith.constant 0 : index
    %c0_57 = arith.constant 0 : index
    %160 = vector.load %arg2[%c0_56, %c0_57] : memref<128x512xf32, #tpu.memory_space<vmem>>, vector<128x512xf32>
    %cst_58 = arith.constant dense<0.000000e+00> : vector<8x512xf32>
    %161 = tpu.matmul %157, %160, %cst_58 {dimension_numbers = #tpu.dot_dimension_numbers<[1], [0], [0], [1], [0, 0, 1, 1], [], []>} : vector<8x128xf32>, vector<128x512xf32>, vector<8x512xf32> -> vector<8x512xf32>
    %162 = arith.addf %159, %161 : vector<8x512xf32>
    %163 = vector.extract_strided_slice %162 {offsets = [0, 0], sizes = [8, 128], strides = [1, 1]} : vector<8x512xf32> to vector<8x128xf32>
    %164 = arith.negf %163 : vector<8x128xf32>
    %165 = math.exp %164 : vector<8x128xf32>
    %cst_59 = arith.constant 1.000000e+00 : f32
    %166 = vector.broadcast %cst_59 : f32 to vector<8x128xf32>
    %167 = arith.addf %166, %165 : vector<8x128xf32>
    %168 = arith.divf %166, %167 : vector<8x128xf32>
    %169 = vector.extract_strided_slice %162 {offsets = [0, 128], sizes = [8, 128], strides = [1, 1]} : vector<8x512xf32> to vector<8x128xf32>
    %170 = arith.negf %169 : vector<8x128xf32>
    %171 = math.exp %170 : vector<8x128xf32>
    %cst_60 = arith.constant 1.000000e+00 : f32
    %172 = vector.broadcast %cst_60 : f32 to vector<8x128xf32>
    %173 = arith.addf %172, %171 : vector<8x128xf32>
    %174 = arith.divf %172, %173 : vector<8x128xf32>
    %175 = vector.extract_strided_slice %162 {offsets = [0, 256], sizes = [8, 128], strides = [1, 1]} : vector<8x512xf32> to vector<8x128xf32>
    %176 = math.tanh %175 : vector<8x128xf32>
    %177 = vector.extract_strided_slice %162 {offsets = [0, 384], sizes = [8, 128], strides = [1, 1]} : vector<8x512xf32> to vector<8x128xf32>
    %178 = arith.negf %177 : vector<8x128xf32>
    %179 = math.exp %178 : vector<8x128xf32>
    %cst_61 = arith.constant 1.000000e+00 : f32
    %180 = vector.broadcast %cst_61 : f32 to vector<8x128xf32>
    %181 = arith.addf %180, %179 : vector<8x128xf32>
    %182 = arith.divf %180, %181 : vector<8x128xf32>
    %183 = arith.mulf %174, %155 : vector<8x128xf32>
    %184 = arith.mulf %168, %176 : vector<8x128xf32>
    %185 = arith.addf %183, %184 : vector<8x128xf32>
    %186 = math.tanh %185 : vector<8x128xf32>
    %187 = arith.mulf %182, %186 : vector<8x128xf32>
    %c40_62 = arith.constant 40 : index
    %c0_63 = arith.constant 0 : index
    %188 = vector.load %arg8[%c40_62, %c0_63] : memref<64x128xf32, #tpu.memory_space<vmem>>, vector<8x128xf32>
    tpu.vector_store %arg8[%c40_62, %c0_63], %187 {strides = array<i32>} : memref<64x128xf32, #tpu.memory_space<vmem>>, vector<8x128xf32>,
    %c48 = arith.constant 48 : index
    %c0_64 = arith.constant 0 : index
    %189 = vector.load %arg7[%c48, %c0_64] : memref<64x512xf32, #tpu.memory_space<vmem>>, vector<8x512xf32>
    %c0_65 = arith.constant 0 : index
    %c0_66 = arith.constant 0 : index
    %190 = vector.load %arg2[%c0_65, %c0_66] : memref<128x512xf32, #tpu.memory_space<vmem>>, vector<128x512xf32>
    %cst_67 = arith.constant dense<0.000000e+00> : vector<8x512xf32>
    %191 = tpu.matmul %187, %190, %cst_67 {dimension_numbers = #tpu.dot_dimension_numbers<[1], [0], [0], [1], [0, 0, 1, 1], [], []>} : vector<8x128xf32>, vector<128x512xf32>, vector<8x512xf32> -> vector<8x512xf32>
    %192 = arith.addf %189, %191 : vector<8x512xf32>
    %193 = vector.extract_strided_slice %192 {offsets = [0, 0], sizes = [8, 128], strides = [1, 1]} : vector<8x512xf32> to vector<8x128xf32>
    %194 = arith.negf %193 : vector<8x128xf32>
    %195 = math.exp %194 : vector<8x128xf32>
    %cst_68 = arith.constant 1.000000e+00 : f32
    %196 = vector.broadcast %cst_68 : f32 to vector<8x128xf32>
    %197 = arith.addf %196, %195 : vector<8x128xf32>
    %198 = arith.divf %196, %197 : vector<8x128xf32>
    %199 = vector.extract_strided_slice %192 {offsets = [0, 128], sizes = [8, 128], strides = [1, 1]} : vector<8x512xf32> to vector<8x128xf32>
    %200 = arith.negf %199 : vector<8x128xf32>
    %201 = math.exp %200 : vector<8x128xf32>
    %cst_69 = arith.constant 1.000000e+00 : f32
    %202 = vector.broadcast %cst_69 : f32 to vector<8x128xf32>
    %203 = arith.addf %202, %201 : vector<8x128xf32>
    %204 = arith.divf %202, %203 : vector<8x128xf32>
    %205 = vector.extract_strided_slice %192 {offsets = [0, 256], sizes = [8, 128], strides = [1, 1]} : vector<8x512xf32> to vector<8x128xf32>
    %206 = math.tanh %205 : vector<8x128xf32>
    %207 = vector.extract_strided_slice %192 {offsets = [0, 384], sizes = [8, 128], strides = [1, 1]} : vector<8x512xf32> to vector<8x128xf32>
    %208 = arith.negf %207 : vector<8x128xf32>
    %209 = math.exp %208 : vector<8x128xf32>
    %cst_70 = arith.constant 1.000000e+00 : f32
    %210 = vector.broadcast %cst_70 : f32 to vector<8x128xf32>
    %211 = arith.addf %210, %209 : vector<8x128xf32>
    %212 = arith.divf %210, %211 : vector<8x128xf32>
    %213 = arith.mulf %204, %185 : vector<8x128xf32>
    %214 = arith.mulf %198, %206 : vector<8x128xf32>
    %215 = arith.addf %213, %214 : vector<8x128xf32>
    %216 = math.tanh %215 : vector<8x128xf32>
    %217 = arith.mulf %212, %216 : vector<8x128xf32>
    %c48_71 = arith.constant 48 : index
    %c0_72 = arith.constant 0 : index
    %218 = vector.load %arg8[%c48_71, %c0_72] : memref<64x128xf32, #tpu.memory_space<vmem>>, vector<8x128xf32>
    tpu.vector_store %arg8[%c48_71, %c0_72], %217 {strides = array<i32>} : memref<64x128xf32, #tpu.memory_space<vmem>>, vector<8x128xf32>,
    %c56 = arith.constant 56 : index
    %c0_73 = arith.constant 0 : index
    %219 = vector.load %arg7[%c56, %c0_73] : memref<64x512xf32, #tpu.memory_space<vmem>>, vector<8x512xf32>
    %c0_74 = arith.constant 0 : index
    %c0_75 = arith.constant 0 : index
    %220 = vector.load %arg2[%c0_74, %c0_75] : memref<128x512xf32, #tpu.memory_space<vmem>>, vector<128x512xf32>
    %cst_76 = arith.constant dense<0.000000e+00> : vector<8x512xf32>
    %221 = tpu.matmul %217, %220, %cst_76 {dimension_numbers = #tpu.dot_dimension_numbers<[1], [0], [0], [1], [0, 0, 1, 1], [], []>} : vector<8x128xf32>, vector<128x512xf32>, vector<8x512xf32> -> vector<8x512xf32>
    %222 = arith.addf %219, %221 : vector<8x512xf32>
    %223 = vector.extract_strided_slice %222 {offsets = [0, 0], sizes = [8, 128], strides = [1, 1]} : vector<8x512xf32> to vector<8x128xf32>
    %224 = arith.negf %223 : vector<8x128xf32>
    %225 = math.exp %224 : vector<8x128xf32>
    %cst_77 = arith.constant 1.000000e+00 : f32
    %226 = vector.broadcast %cst_77 : f32 to vector<8x128xf32>
    %227 = arith.addf %226, %225 : vector<8x128xf32>
    %228 = arith.divf %226, %227 : vector<8x128xf32>
    %229 = vector.extract_strided_slice %222 {offsets = [0, 128], sizes = [8, 128], strides = [1, 1]} : vector<8x512xf32> to vector<8x128xf32>
    %230 = arith.negf %229 : vector<8x128xf32>
    %231 = math.exp %230 : vector<8x128xf32>
    %cst_78 = arith.constant 1.000000e+00 : f32
    %232 = vector.broadcast %cst_78 : f32 to vector<8x128xf32>
    %233 = arith.addf %232, %231 : vector<8x128xf32>
    %234 = arith.divf %232, %233 : vector<8x128xf32>
    %235 = vector.extract_strided_slice %222 {offsets = [0, 256], sizes = [8, 128], strides = [1, 1]} : vector<8x512xf32> to vector<8x128xf32>
    %236 = math.tanh %235 : vector<8x128xf32>
    %237 = vector.extract_strided_slice %222 {offsets = [0, 384], sizes = [8, 128], strides = [1, 1]} : vector<8x512xf32> to vector<8x128xf32>
    %238 = arith.negf %237 : vector<8x128xf32>
    %239 = math.exp %238 : vector<8x128xf32>
    %cst_79 = arith.constant 1.000000e+00 : f32
    %240 = vector.broadcast %cst_79 : f32 to vector<8x128xf32>
    %241 = arith.addf %240, %239 : vector<8x128xf32>
    %242 = arith.divf %240, %241 : vector<8x128xf32>
    %243 = arith.mulf %234, %215 : vector<8x128xf32>
    %244 = arith.mulf %228, %236 : vector<8x128xf32>
    %245 = arith.addf %243, %244 : vector<8x128xf32>
    %246 = math.tanh %245 : vector<8x128xf32>
    %247 = arith.mulf %242, %246 : vector<8x128xf32>
    %c56_80 = arith.constant 56 : index
    %c0_81 = arith.constant 0 : index
    %248 = vector.load %arg8[%c56_80, %c0_81] : memref<64x128xf32, #tpu.memory_space<vmem>>, vector<8x128xf32>
    tpu.vector_store %arg8[%c56_80, %c0_81], %247 {strides = array<i32>} : memref<64x128xf32, #tpu.memory_space<vmem>>, vector<8x128xf32>,
    %c0_82 = arith.constant 0 : index
    %c0_83 = arith.constant 0 : index
    %249 = vector.load %arg8[%c0_82, %c0_83] : memref<64x128xf32, #tpu.memory_space<vmem>>, vector<64x128xf32>
    %c0_84 = arith.constant 0 : index
    %c0_85 = arith.constant 0 : index
    %250 = vector.load %arg4[%c0_84, %c0_85] : memref<128x128xf32, #tpu.memory_space<vmem>>, vector<128x128xf32>
    %cst_86 = arith.constant dense<0.000000e+00> : vector<64x128xf32>
    %251 = tpu.matmul %249, %250, %cst_86 {dimension_numbers = #tpu.dot_dimension_numbers<[1], [0], [0], [1], [0, 0, 1, 1], [], []>} : vector<64x128xf32>, vector<128x128xf32>, vector<64x128xf32> -> vector<64x128xf32>
    %c0_87 = arith.constant 0 : index
    %c0_88 = arith.constant 0 : index
    %252 = vector.load %arg5[%c0_87, %c0_88] : memref<1x128xf32, #tpu.memory_space<vmem>>, vector<1x128xf32>
    %253 = vector.broadcast %252 : vector<1x128xf32> to vector<64x128xf32>
    %254 = arith.addf %251, %253 : vector<64x128xf32>
    %c0_89 = arith.constant 0 : index
    %c0_90 = arith.constant 0 : index
    %255 = vector.load %arg6[%c0_89, %c0_90] : memref<64x128xf32, #tpu.memory_space<vmem>>, vector<64x128xf32>
    tpu.vector_store %arg6[%c0_89, %c0_90], %254 {strides = array<i32>} : memref<64x128xf32, #tpu.memory_space<vmem>>, vector<64x128xf32>,
    return
  }
}

</mosaic_0001>

<llo_original>
// kernel: air_model_forward.1
$region0: #{air_model_forward.1}
  #allocation0 [shape = 'u32[]', space=smem, size = 0x4, offset = 0x4, fixed_abs, tag = 'smem constant byte address 0x4 - core index']
  #allocation1 [shape = 'u32[144,128]{1,0:T(1,128)}', space=vmem, size = 0x12000, scoped, tag = 'internal scratch']
  #allocation2 [shape = 'f32[64,512]{1,0:T(8,128)}', space=vmem, size = 0x20000, scoped, tag = 'scratch operand']
  #allocation3 [shape = 'f32[64,128]{1,0:T(8,128)}', space=vmem, size = 0x8000, scoped, tag = 'scratch operand']
  %s0 = inlined_call_operand.vmem [shape: f32[64,8], index: 0, kind: input, shape index: {}]
  %s1 = inlined_call_operand.vmem [shape: f32[8,512], index: 1, kind: input, shape index: {}]
  %s2 = inlined_call_operand.vmem [shape: f32[128,512], index: 2, kind: input, shape index: {}]
  %s3 = inlined_call_operand.vmem [shape: f32[1,512], index: 3, kind: input, shape index: {}]
  %s4 = inlined_call_operand.vmem [shape: f32[128,128], index: 4, kind: input, shape index: {}]
  %s5 = inlined_call_operand.vmem [shape: f32[1,128], index: 5, kind: input, shape index: {}]
  %s6 = inlined_call_operand.vmem [shape: f32[64,128], index: 6, kind: output, shape index: {}]
  %s7 = sld [smem:[#allocation0]]
  $region34: #{air_model_forward.1} parent=0
    _
  %s9 = ssub.s32 1, %s7
  %s10 = scalar_select 0, %s9, %s7
  // Predicated region
  $region2: #{air_model_forward.1} parent=0 // pred_check
    _
  $region3: #{air_model_forward.1} parent=0 // pred_check_branch
    %12 = sbr.rel (0) target = $region5
  $region4: #{air_model_forward.1} parent=0 // pred_region
    _
  $region5: #{air_model_forward.1} parent=0 // pred_fallthru
    _
  // Predicated region
  $region6: #{air_model_forward.1} parent=0 // pred_check
    _
  $region7: #{air_model_forward.1} parent=0 // pred_check_branch
    %14 = sbr.rel (0) target = $region9
  $region8: #{air_model_forward.1} parent=0 // pred_region
    _
  $region9: #{air_model_forward.1} parent=0 // pred_fallthru
    _
  // Predicated region
  $region10: #{air_model_forward.1} parent=0 // pred_check
    _
  $region11: #{air_model_forward.1} parent=0 // pred_check_branch
    %16 = sbr.rel (0) target = $region13
  $region12: #{air_model_forward.1} parent=0 // pred_region
    _
  $region13: #{air_model_forward.1} parent=0 // pred_fallthru
    _
  // Predicated region
  $region14: #{air_model_forward.1} parent=0 // pred_check
    _
  $region15: #{air_model_forward.1} parent=0 // pred_check_branch
    %18 = sbr.rel (0) target = $region17
  $region16: #{air_model_forward.1} parent=0 // pred_region
    _
  $region17: #{air_model_forward.1} parent=0 // pred_fallthru
    _
  // Predicated region
  $region18: #{air_model_forward.1} parent=0 // pred_check
    _
  $region19: #{air_model_forward.1} parent=0 // pred_check_branch
    %20 = sbr.rel (0) target = $region21
  $region20: #{air_model_forward.1} parent=0 // pred_region
    _
  $region21: #{air_model_forward.1} parent=0 // pred_fallthru
    _
  // Predicated region
  $region22: #{air_model_forward.1} parent=0 // pred_check
    _
  $region23: #{air_model_forward.1} parent=0 // pred_check_branch
    %22 = sbr.rel (0) target = $region25
  $region24: #{air_model_forward.1} parent=0 // pred_region
    _
  $region25: #{air_model_forward.1} parent=0 // pred_fallthru
    _
  %v23 = vld [vmem:[%s0] sm:$0xff]
  %v24 = vld [vmem:[%s0 + $0x8] sm:$0xff]
  %v25 = vld [vmem:[%s0 + $0x10] sm:$0xff]
  %v26 = vld [vmem:[%s0 + $0x18] sm:$0xff]
  %v27 = vld [vmem:[%s0 + $0x20] sm:$0xff]
  %v28 = vld [vmem:[%s0 + $0x28] sm:$0xff]
  %v29 = vld [vmem:[%s0 + $0x30] sm:$0xff]
  %v30 = vld [vmem:[%s0 + $0x38] sm:$0xff]
  %v31 = vld [vmem:[%s1] sm:$0xff]
  %v32 = vld [vmem:[%s1 + $0x8] sm:$0xff]
  %v33 = vld [vmem:[%s1 + $0x10] sm:$0xff]
  %v34 = vld [vmem:[%s1 + $0x18] sm:$0xff]
  %v35 = vld [vmem:[%s3] sm:$0xf]
  %v37 = vlaneseq
  %v38 = vshrl.u32 %v37, 7
  %v39 = vsub.s32 0, %v38
  %v40 = vrot.slane %v35, %v39
  %v41 = vlaneseq
  %v42 = vshrl.u32 %v41, 7
  %v43 = vsub.s32 1, %v42
  %v44 = vrot.slane %v35, %v43
  %v45 = vlaneseq
  %v46 = vshrl.u32 %v45, 7
  %v47 = vsub.s32 2, %v46
  %v48 = vrot.slane %v35, %v47
  %v49 = vlaneseq
  %v50 = vshrl.u32 %v49, 7
  %v51 = vsub.s32 3, %v50
  %v52 = vrot.slane %v35, %v51
  %vm57 = vcmask 64512
  %v59 = vsel %vm57, %v23, 0
  %v62 = vsel %vm57, %v24, 0
  %v65 = vsel %vm57, %v25, 0
  %v68 = vsel %vm57, %v26, 0
  %v71 = vsel %vm57, %v27, 0
  %v74 = vsel %vm57, %v28, 0
  %v77 = vsel %vm57, %v29, 0
  %v80 = vsel %vm57, %v30, 0
  %82 = vmatprep.subr.mxu0 %v32
  %83 = vmatpush1.msra.mxu0 %v31
  %84 = vmatprep.subr.mxu0 0.0
  %85 = vmatpush1.msra.mxu0 0.0
  %86 = vmatprep.subr.mxu0 0.0
  %87 = vmatpush1.msra.mxu0 0.0
  %88 = vmatprep.subr.mxu0 0.0
  %89 = vmatpush1.msra.mxu0 0.0
  %90 = vmatprep.subr.mxu0 0.0
  %91 = vmatpush1.msra.mxu0 0.0
  %92 = vmatprep.subr.mxu0 0.0
  %93 = vmatpush1.msra.mxu0 0.0
  %94 = vmatprep.subr.mxu0 0.0
  %95 = vmatpush1.msra.mxu0 0.0
  %96 = vmatprep.subr.mxu0 0.0
  %97 = vmatpush1.msra.mxu0 0.0
  %98 = vmatprep.subr.mxu0 0.0
  %99 = vmatpush1.msra.mxu0 0.0
  %100 = vmatprep.subr.mxu0 0.0
  %101 = vmatpush1.msra.mxu0 0.0
  %102 = vmatprep.subr.mxu0 0.0
  %103 = vmatpush1.msra.mxu0 0.0
  %104 = vmatprep.subr.mxu0 0.0
  %105 = vmatpush1.msra.mxu0 0.0
  %106 = vmatprep.subr.mxu0 0.0
  %107 = vmatpush1.msra.mxu0 0.0
  %108 = vmatprep.subr.mxu0 0.0
  %109 = vmatpush1.msra.mxu0 0.0
  %110 = vmatprep.subr.mxu0 0.0
  %111 = vmatpush1.msra.mxu0 0.0
  %112 = vmatprep.subr.mxu0 0.0
  %113 = vmatpush1.msra.mxu0 0.0
  %114 = vmatprep.subr.mxu0 0.0
  %115 = vmatpush1.msra.mxu0 0.0
  %116 = vmatprep.subr.mxu0 0.0
  %117 = vmatpush1.msra.mxu0 0.0
  %118 = vmatprep.subr.mxu0 0.0
  %119 = vmatpush1.msra.mxu0 0.0
  %120 = vmatprep.subr.mxu0 0.0
  %121 = vmatpush1.msra.mxu0 0.0
  %122 = vmatprep.subr.mxu0 0.0
  %123 = vmatpush1.msra.mxu0 0.0
  %124 = vmatprep.subr.mxu0 0.0
  %125 = vmatpush1.msra.mxu0 0.0
  %126 = vmatprep.subr.mxu0 0.0
  %127 = vmatpush1.msra.mxu0 0.0
  %128 = vmatprep.subr.mxu0 0.0
  %129 = vmatpush1.msra.mxu0 0.0
  %130 = vmatprep.subr.mxu0 0.0
  %131 = vmatpush1.msra.mxu0 0.0
  %132 = vmatprep.subr.mxu0 0.0
  %133 = vmatpush1.msra.mxu0 0.0
  %134 = vmatprep.subr.mxu0 0.0
  %135 = vmatpush1.msra.mxu0 0.0
  %136 = vmatprep.subr.mxu0 0.0
  %137 = vmatpush1.msra.mxu0 0.0
  %138 = vmatprep.subr.mxu0 0.0
  %139 = vmatpush1.msra.mxu0 0.0
  %140 = vmatprep.subr.mxu0 0.0
  %141 = vmatpush1.msra.mxu0 0.0
  %142 = vmatprep.subr.mxu0 0.0
  %143 = vmatpush1.msra.mxu0 0.0
  %144 = vmatprep.subr.mxu0 0.0
  %145 = vmatpush1.msra.mxu0 0.0
  %146 = vmatprep.mubr.f32.mxu0 0.0
  %147 = vmatmul.mubr.f32.gmra.mrb[0].mxu0 %v59
  %v148 = vpop.f32.mrb[0].mxu0
  %v149 = vadd.f32 %v40, %v148
  %v150 = vpop.f32.mrb[0].mxu0
  %v151 = vadd.f32 %v44, %v150
  %152 = vmatprep.mubr.f32.mxu0 0.0
  %153 = vmatmul.mubr.f32.gmra.mrb[0].mxu0 %v62
  %v154 = vpop.f32.mrb[0].mxu0
  %v155 = vadd.f32 %v40, %v154
  %v156 = vpop.f32.mrb[0].mxu0
  %v157 = vadd.f32 %v44, %v156
  %158 = vmatprep.mubr.f32.mxu0 0.0
  %159 = vmatmul.mubr.f32.gmra.mrb[0].mxu0 %v65
  %v160 = vpop.f32.mrb[0].mxu0
  %v161 = vadd.f32 %v40, %v160
  %v162 = vpop.f32.mrb[0].mxu0
  %v163 = vadd.f32 %v44, %v162
  %164 = vmatprep.mubr.f32.mxu0 0.0
  %165 = vmatmul.mubr.f32.gmra.mrb[0].mxu0 %v68
  %v166 = vpop.f32.mrb[0].mxu0
  %v167 = vadd.f32 %v40, %v166
  %v168 = vpop.f32.mrb[0].mxu0
  %v169 = vadd.f32 %v44, %v168
  %170 = vmatprep.mubr.f32.mxu0 0.0
  %171 = vmatmul.mubr.f32.gmra.mrb[0].mxu0 %v71
  %v172 = vpop.f32.mrb[0].mxu0
  %v173 = vadd.f32 %v40, %v172
  %v174 = vpop.f32.mrb[0].mxu0
  %v175 = vadd.f32 %v44, %v174
  %176 = vmatprep.mubr.f32.mxu0 0.0
  %177 = vmatmul.mubr.f32.gmra.mrb[0].mxu0 %v74
  %v178 = vpop.f32.mrb[0].mxu0
  %v179 = vadd.f32 %v40, %v178
  %v180 = vpop.f32.mrb[0].mxu0
  %v181 = vadd.f32 %v44, %v180
  %182 = vmatprep.mubr.f32.mxu0 0.0
  %183 = vmatmul.mubr.f32.gmra.mrb[0].mxu0 %v77
  %v184 = vpop.f32.mrb[0].mxu0
  %v185 = vadd.f32 %v40, %v184
  %v186 = vpop.f32.mrb[0].mxu0
  %v187 = vadd.f32 %v44, %v186
  %188 = vmatprep.mubr.f32.mxu0 0.0
  %189 = vmatmul.mubr.f32.gmra.mrb[0].mxu0 %v80
  %v190 = vpop.f32.mrb[0].mxu0
  %v191 = vadd.f32 %v40, %v190
  %v192 = vpop.f32.mrb[0].mxu0
  %v193 = vadd.f32 %v44, %v192
  %194 = vdwg.mxu0
  %195 = vmatprep.subr.mxu0 %v34
  %196 = vmatpush1.msra.mxu0 %v33
  %197 = vmatprep.subr.mxu0 0.0
  %198 = vmatpush1.msra.mxu0 0.0
  %199 = vmatprep.subr.mxu0 0.0
  %200 = vmatpush1.msra.mxu0 0.0
  %201 = vmatprep.subr.mxu0 0.0
  %202 = vmatpush1.msra.mxu0 0.0
  %203 = vmatprep.subr.mxu0 0.0
  %204 = vmatpush1.msra.mxu0 0.0
  %205 = vmatprep.subr.mxu0 0.0
  %206 = vmatpush1.msra.mxu0 0.0
  %207 = vmatprep.subr.mxu0 0.0
  %208 = vmatpush1.msra.mxu0 0.0
  %209 = vmatprep.subr.mxu0 0.0
  %210 = vmatpush1.msra.mxu0 0.0
  %211 = vmatprep.subr.mxu0 0.0
  %212 = vmatpush1.msra.mxu0 0.0
  %213 = vmatprep.subr.mxu0 0.0
  %214 = vmatpush1.msra.mxu0 0.0
  %215 = vmatprep.subr.mxu0 0.0
  %216 = vmatpush1.msra.mxu0 0.0
  %217 = vmatprep.subr.mxu0 0.0
  %218 = vmatpush1.msra.mxu0 0.0
  %219 = vmatprep.subr.mxu0 0.0
  %220 = vmatpush1.msra.mxu0 0.0
  %221 = vmatprep.subr.mxu0 0.0
  %222 = vmatpush1.msra.mxu0 0.0
  %223 = vmatprep.subr.mxu0 0.0
  %224 = vmatpush1.msra.mxu0 0.0
  %225 = vmatprep.subr.mxu0 0.0
  %226 = vmatpush1.msra.mxu0 0.0
  %227 = vmatprep.subr.mxu0 0.0
  %228 = vmatpush1.msra.mxu0 0.0
  %229 = vmatprep.subr.mxu0 0.0
  %230 = vmatpush1.msra.mxu0 0.0
  %231 = vmatprep.subr.mxu0 0.0
  %232 = vmatpush1.msra.mxu0 0.0
  %233 = vmatprep.subr.mxu0 0.0
  %234 = vmatpush1.msra.mxu0 0.0
  %235 = vmatprep.subr.mxu0 0.0
  %236 = vmatpush1.msra.mxu0 0.0
  %237 = vmatprep.subr.mxu0 0.0
  %238 = vmatpush1.msra.mxu0 0.0
  %239 = vmatprep.subr.mxu0 0.0
  %240 = vmatpush1.msra.mxu0 0.0
  %241 = vmatprep.subr.mxu0 0.0
  %242 = vmatpush1.msra.mxu0 0.0
  %243 = vmatprep.subr.mxu0 0.0
  %244 = vmatpush1.msra.mxu0 0.0
  %245 = vmatprep.subr.mxu0 0.0
  %246 = vmatpush1.msra.mxu0 0.0
  %247 = vmatprep.subr.mxu0 0.0
  %248 = vmatpush1.msra.mxu0 0.0
  %249 = vmatprep.subr.mxu0 0.0
  %250 = vmatpush1.msra.mxu0 0.0
  %251 = vmatprep.subr.mxu0 0.0
  %252 = vmatpush1.msra.mxu0 0.0
  %253 = vmatprep.subr.mxu0 0.0
  %254 = vmatpush1.msra.mxu0 0.0
  %255 = vmatprep.subr.mxu0 0.0
  %256 = vmatpush1.msra.mxu0 0.0
  %257 = vmatprep.subr.mxu0 0.0
  %258 = vmatpush1.msra.mxu0 0.0
  %259 = vmatprep.mubr.f32.mxu0 0.0
  %260 = vmatmul.mubr.f32.gmra.mrb[0].mxu0 %v59
  %v261 = vpop.f32.mrb[0].mxu0
  %v262 = vadd.f32 %v48, %v261
  %v263 = vpop.f32.mrb[0].mxu0
  %v264 = vadd.f32 %v52, %v263
  %265 = vmatprep.mubr.f32.mxu0 0.0
  %266 = vmatmul.mubr.f32.gmra.mrb[0].mxu0 %v62
  %v267 = vpop.f32.mrb[0].mxu0
  %v268 = vadd.f32 %v48, %v267
  %v269 = vpop.f32.mrb[0].mxu0
  %v270 = vadd.f32 %v52, %v269
  %271 = vmatprep.mubr.f32.mxu0 0.0
  %272 = vmatmul.mubr.f32.gmra.mrb[0].mxu0 %v65
  %v273 = vpop.f32.mrb[0].mxu0
  %v274 = vadd.f32 %v48, %v273
  %v275 = vpop.f32.mrb[0].mxu0
  %v276 = vadd.f32 %v52, %v275
  %277 = vmatprep.mubr.f32.mxu0 0.0
  %278 = vmatmul.mubr.f32.gmra.mrb[0].mxu0 %v68
  %v279 = vpop.f32.mrb[0].mxu0
  %v280 = vadd.f32 %v48, %v279
  %v281 = vpop.f32.mrb[0].mxu0
  %v282 = vadd.f32 %v52, %v281
  %283 = vmatprep.mubr.f32.mxu0 0.0
  %284 = vmatmul.mubr.f32.gmra.mrb[0].mxu0 %v71
  %v285 = vpop.f32.mrb[0].mxu0
  %v286 = vadd.f32 %v48, %v285
  %v287 = vpop.f32.mrb[0].mxu0
  %v288 = vadd.f32 %v52, %v287
  %289 = vmatprep.mubr.f32.mxu0 0.0
  %290 = vmatmul.mubr.f32.gmra.mrb[0].mxu0 %v74
  %v291 = vpop.f32.mrb[0].mxu0
  %v292 = vadd.f32 %v48, %v291
  %v293 = vpop.f32.mrb[0].mxu0
  %v294 = vadd.f32 %v52, %v293
  %295 = vmatprep.mubr.f32.mxu0 0.0
  %296 = vmatmul.mubr.f32.gmra.mrb[0].mxu0 %v77
  %v297 = vpop.f32.mrb[0].mxu0
  %v298 = vadd.f32 %v48, %v297
  %v299 = vpop.f32.mrb[0].mxu0
  %v300 = vadd.f32 %v52, %v299
  %301 = vmatprep.mubr.f32.mxu0 0.0
  %302 = vmatmul.mubr.f32.gmra.mrb[0].mxu0 %v80
  %v303 = vpop.f32.mrb[0].mxu0
  %v304 = vadd.f32 %v48, %v303
  %v305 = vpop.f32.mrb[0].mxu0
  %v306 = vadd.f32 %v52, %v305
  %307 = vdwg.mxu0
  %308 = vst [vmem:[#allocation2] sm:$0xff] %v149
  %309 = vst [vmem:[#allocation2 + $0x8] sm:$0xff] %v151
  %310 = vst [vmem:[#allocation2 + $0x10] sm:$0xff] %v262
  %311 = vst [vmem:[#allocation2 + $0x18] sm:$0xff] %v264
  %312 = vst [vmem:[#allocation2 + $0x20] sm:$0xff] %v155
  %313 = vst [vmem:[#allocation2 + $0x28] sm:$0xff] %v157
  %314 = vst [vmem:[#allocation2 + $0x30] sm:$0xff] %v268
  %315 = vst [vmem:[#allocation2 + $0x38] sm:$0xff] %v270
  %316 = vst [vmem:[#allocation2 + $0x40] sm:$0xff] %v161
  %317 = vst [vmem:[#allocation2 + $0x48] sm:$0xff] %v163
  %318 = vst [vmem:[#allocation2 + $0x50] sm:$0xff] %v274
  %319 = vst [vmem:[#allocation2 + $0x58] sm:$0xff] %v276
  %320 = vst [vmem:[#allocation2 + $0x60] sm:$0xff] %v167
  %321 = vst [vmem:[#allocation2 + $0x68] sm:$0xff] %v169
  %322 = vst [vmem:[#allocation2 + $0x70] sm:$0xff] %v280
  %323 = vst [vmem:[#allocation2 + $0x78] sm:$0xff] %v282
  %324 = vst [vmem:[#allocation2 + $0x80] sm:$0xff] %v173
  %325 = vst [vmem:[#allocation2 + $0x88] sm:$0xff] %v175
  %326 = vst [vmem:[#allocation2 + $0x90] sm:$0xff] %v286
  %327 = vst [vmem:[#allocation2 + $0x98] sm:$0xff] %v288
  %328 = vst [vmem:[#allocation2 + $0xa0] sm:$0xff] %v179
  %329 = vst [vmem:[#allocation2 + $0xa8] sm:$0xff] %v181
  %330 = vst [vmem:[#allocation2 + $0xb0] sm:$0xff] %v292
  %331 = vst [vmem:[#allocation2 + $0xb8] sm:$0xff] %v294
  %332 = vst [vmem:[#allocation2 + $0xc0] sm:$0xff] %v185
  %333 = vst [vmem:[#allocation2 + $0xc8] sm:$0xff] %v187
  %334 = vst [vmem:[#allocation2 + $0xd0] sm:$0xff] %v298
  %335 = vst [vmem:[#allocation2 + $0xd8] sm:$0xff] %v300
  %336 = vst [vmem:[#allocation2 + $0xe0] sm:$0xff] %v191
  %337 = vst [vmem:[#allocation2 + $0xe8] sm:$0xff] %v193
  %338 = vst [vmem:[#allocation2 + $0xf0] sm:$0xff] %v304
  %339 = vst [vmem:[#allocation2 + $0xf8] sm:$0xff] %v306
  %v340 = vld [vmem:[#allocation2] sm:$0xff]
  %v341 = vld [vmem:[#allocation2 + $0x8] sm:$0xff]
  %v342 = vld [vmem:[#allocation2 + $0x10] sm:$0xff]
  %v343 = vld [vmem:[#allocation2 + $0x18] sm:$0xff]
  %v344 = vld [vmem:[%s2] sm:$0xff]
  %v345 = vld [vmem:[%s2 + $0x8] sm:$0xff]
  %v346 = vld [vmem:[%s2 + $0x10] sm:$0xff]
  %v347 = vld [vmem:[%s2 + $0x18] sm:$0xff]
  %v348 = vld [vmem:[%s2 + $0x20] sm:$0xff]
  %v349 = vld [vmem:[%s2 + $0x28] sm:$0xff]
  %v350 = vld [vmem:[%s2 + $0x30] sm:$0xff]
  %v351 = vld [vmem:[%s2 + $0x38] sm:$0xff]
  %v352 = vld [vmem:[%s2 + $0x40] sm:$0xff]
  %v353 = vld [vmem:[%s2 + $0x48] sm:$0xff]
  %v354 = vld [vmem:[%s2 + $0x50] sm:$0xff]
  %v355 = vld [vmem:[%s2 + $0x58] sm:$0xff]
  %v356 = vld [vmem:[%s2 + $0x60] sm:$0xff]
  %v357 = vld [vmem:[%s2 + $0x68] sm:$0xff]
  %v358 = vld [vmem:[%s2 + $0x70] sm:$0xff]
  %v359 = vld [vmem:[%s2 + $0x78] sm:$0xff]
  %v360 = vld [vmem:[%s2 + $0x80] sm:$0xff]
  %v361 = vld [vmem:[%s2 + $0x88] sm:$0xff]
  %v362 = vld [vmem:[%s2 + $0x90] sm:$0xff]
  %v363 = vld [vmem:[%s2 + $0x98] sm:$0xff]
  %v364 = vld [vmem:[%s2 + $0xa0] sm:$0xff]
  %v365 = vld [vmem:[%s2 + $0xa8] sm:$0xff]
  %v366 = vld [vmem:[%s2 + $0xb0] sm:$0xff]
  %v367 = vld [vmem:[%s2 + $0xb8] sm:$0xff]
  %v368 = vld [vmem:[%s2 + $0xc0] sm:$0xff]
  %v369 = vld [vmem:[%s2 + $0xc8] sm:$0xff]
  %v370 = vld [vmem:[%s2 + $0xd0] sm:$0xff]
  %v371 = vld [vmem:[%s2 + $0xd8] sm:$0xff]
  %v372 = vld [vmem:[%s2 + $0xe0] sm:$0xff]
  %v373 = vld [vmem:[%s2 + $0xe8] sm:$0xff]
  %v374 = vld [vmem:[%s2 + $0xf0] sm:$0xff]
  %v375 = vld [vmem:[%s2 + $0xf8] sm:$0xff]
  %v376 = vld [vmem:[%s2 + $0x100] sm:$0xff]
  %v377 = vld [vmem:[%s2 + $0x108] sm:$0xff]
  %v378 = vld [vmem:[%s2 + $0x110] sm:$0xff]
  %v379 = vld [vmem:[%s2 + $0x118] sm:$0xff]
  %v380 = vld [vmem:[%s2 + $0x120] sm:$0xff]
  %v381 = vld [vmem:[%s2 + $0x128] sm:$0xff]
  %v382 = vld [vmem:[%s2 + $0x130] sm:$0xff]
  %v383 = vld [vmem:[%s2 + $0x138] sm:$0xff]
  %v384 = vld [vmem:[%s2 + $0x140] sm:$0xff]
  %v385 = vld [vmem:[%s2 + $0x148] sm:$0xff]
  %v386 = vld [vmem:[%s2 + $0x150] sm:$0xff]
  %v387 = vld [vmem:[%s2 + $0x158] sm:$0xff]
  %v388 = vld [vmem:[%s2 + $0x160] sm:$0xff]
  %v389 = vld [vmem:[%s2 + $0x168] sm:$0xff]
  %v390 = vld [vmem:[%s2 + $0x170] sm:$0xff]
  %v391 = vld [vmem:[%s2 + $0x178] sm:$0xff]
  %v392 = vld [vmem:[%s2 + $0x180] sm:$0xff]
  %v393 = vld [vmem:[%s2 + $0x188] sm:$0xff]
  %v394 = vld [vmem:[%s2 + $0x190] sm:$0xff]
  %v395 = vld [vmem:[%s2 + $0x198] sm:$0xff]
  %v396 = vld [vmem:[%s2 + $0x1a0] sm:$0xff]
  %v397 = vld [vmem:[%s2 + $0x1a8] sm:$0xff]
  %v398 = vld [vmem:[%s2 + $0x1b0] sm:$0xff]
  %v399 = vld [vmem:[%s2 + $0x1b8] sm:$0xff]
  %v400 = vld [vmem:[%s2 + $0x1c0] sm:$0xff]
  %v401 = vld [vmem:[%s2 + $0x1c8] sm:$0xff]
  %v402 = vld [vmem:[%s2 + $0x1d0] sm:$0xff]
  %v403 = vld [vmem:[%s2 + $0x1d8] sm:$0xff]
  %v404 = vld [vmem:[%s2 + $0x1e0] sm:$0xff]
  %v405 = vld [vmem:[%s2 + $0x1e8] sm:$0xff]
  %v406 = vld [vmem:[%s2 + $0x1f0] sm:$0xff]
  %v407 = vld [vmem:[%s2 + $0x1f8] sm:$0xff]
  %408 = vmatprep.subr.mxu0 %v345
  %409 = vmatpush1.msra.mxu0 %v344
  %410 = vmatprep.subr.mxu0 %v349
  %411 = vmatpush1.msra.mxu0 %v348
  %412 = vmatprep.subr.mxu0 %v353
  %413 = vmatpush1.msra.mxu0 %v352
  %414 = vmatprep.subr.mxu0 %v357
  %415 = vmatpush1.msra.mxu0 %v356
  %416 = vmatprep.subr.mxu0 %v361
  %417 = vmatpush1.msra.mxu0 %v360
  %418 = vmatprep.subr.mxu0 %v365
  %419 = vmatpush1.msra.mxu0 %v364
  %420 = vmatprep.subr.mxu0 %v369
  %421 = vmatpush1.msra.mxu0 %v368
  %422 = vmatprep.subr.mxu0 %v373
  %423 = vmatpush1.msra.mxu0 %v372
  %424 = vmatprep.subr.mxu0 %v377
  %425 = vmatpush1.msra.mxu0 %v376
  %426 = vmatprep.subr.mxu0 %v381
  %427 = vmatpush1.msra.mxu0 %v380
  %428 = vmatprep.subr.mxu0 %v385
  %429 = vmatpush1.msra.mxu0 %v384
  %430 = vmatprep.subr.mxu0 %v389
  %431 = vmatpush1.msra.mxu0 %v388
  %432 = vmatprep.subr.mxu0 %v393
  %433 = vmatpush1.msra.mxu0 %v392
  %434 = vmatprep.subr.mxu0 %v397
  %435 = vmatpush1.msra.mxu0 %v396
  %436 = vmatprep.subr.mxu0 %v401
  %437 = vmatpush1.msra.mxu0 %v400
  %438 = vmatprep.subr.mxu0 %v405
  %439 = vmatpush1.msra.mxu0 %v404
  %440 = vmatprep.subr.mxu0 0.0
  %441 = vmatpush1.msra.mxu0 0.0
  %442 = vmatprep.subr.mxu0 0.0
  %443 = vmatpush1.msra.mxu0 0.0
  %444 = vmatprep.subr.mxu0 0.0
  %445 = vmatpush1.msra.mxu0 0.0
  %446 = vmatprep.subr.mxu0 0.0
  %447 = vmatpush1.msra.mxu0 0.0
  %448 = vmatprep.subr.mxu0 0.0
  %449 = vmatpush1.msra.mxu0 0.0
  %450 = vmatprep.subr.mxu0 0.0
  %451 = vmatpush1.msra.mxu0 0.0
  %452 = vmatprep.subr.mxu0 0.0
  %453 = vmatpush1.msra.mxu0 0.0
  %454 = vmatprep.subr.mxu0 0.0
  %455 = vmatpush1.msra.mxu0 0.0
  %456 = vmatprep.subr.mxu0 0.0
  %457 = vmatpush1.msra.mxu0 0.0
  %458 = vmatprep.subr.mxu0 0.0
  %459 = vmatpush1.msra.mxu0 0.0
  %460 = vmatprep.subr.mxu0 0.0
  %461 = vmatpush1.msra.mxu0 0.0
  %462 = vmatprep.subr.mxu0 0.0
  %463 = vmatpush1.msra.mxu0 0.0
  %464 = vmatprep.subr.mxu0 0.0
  %465 = vmatpush1.msra.mxu0 0.0
  %466 = vmatprep.subr.mxu0 0.0
  %467 = vmatpush1.msra.mxu0 0.0
  %468 = vmatprep.subr.mxu0 0.0
  %469 = vmatpush1.msra.mxu0 0.0
  %470 = vmatprep.subr.mxu0 0.0
  %471 = vmatpush1.msra.mxu0 0.0
  %472 = vmatprep.mubr.f32.mxu0 0.0
  %473 = vmatmul.mubr.f32.gmra.mrb[0].mxu0 0.0
  %v474 = vpop.f32.mrb[0].mxu0
  %v475 = vadd.f32 0.0, %v474
  %v476 = vpop.f32.mrb[0].mxu0
  %v477 = vadd.f32 0.0, %v476
  %478 = vdwg.mxu0
  %479 = vmatprep.subr.mxu0 %v347
  %480 = vmatpush1.msra.mxu0 %v346
  %481 = vmatprep.subr.mxu0 %v351
  %482 = vmatpush1.msra.mxu0 %v350
  %483 = vmatprep.subr.mxu0 %v355
  %484 = vmatpush1.msra.mxu0 %v354
  %485 = vmatprep.subr.mxu0 %v359
  %486 = vmatpush1.msra.mxu0 %v358
  %487 = vmatprep.subr.mxu0 %v363
  %488 = vmatpush1.msra.mxu0 %v362
  %489 = vmatprep.subr.mxu0 %v367
  %490 = vmatpush1.msra.mxu0 %v366
  %491 = vmatprep.subr.mxu0 %v371
  %492 = vmatpush1.msra.mxu0 %v370
  %493 = vmatprep.subr.mxu0 %v375
  %494 = vmatpush1.msra.mxu0 %v374
  %495 = vmatprep.subr.mxu0 %v379
  %496 = vmatpush1.msra.mxu0 %v378
  %497 = vmatprep.subr.mxu0 %v383
  %498 = vmatpush1.msra.mxu0 %v382
  %499 = vmatprep.subr.mxu0 %v387
  %500 = vmatpush1.msra.mxu0 %v386
  %501 = vmatprep.subr.mxu0 %v391
  %502 = vmatpush1.msra.mxu0 %v390
  %503 = vmatprep.subr.mxu0 %v395
  %504 = vmatpush1.msra.mxu0 %v394
  %505 = vmatprep.subr.mxu0 %v399
  %506 = vmatpush1.msra.mxu0 %v398
  %507 = vmatprep.subr.mxu0 %v403
  %508 = vmatpush1.msra.mxu0 %v402
  %509 = vmatprep.subr.mxu0 %v407
  %510 = vmatpush1.msra.mxu0 %v406
  %511 = vmatprep.subr.mxu0 0.0
  %512 = vmatpush1.msra.mxu0 0.0
  %513 = vmatprep.subr.mxu0 0.0
  %514 = vmatpush1.msra.mxu0 0.0
  %515 = vmatprep.subr.mxu0 0.0
  %516 = vmatpush1.msra.mxu0 0.0
  %517 = vmatprep.subr.mxu0 0.0
  %518 = vmatpush1.msra.mxu0 0.0
  %519 = vmatprep.subr.mxu0 0.0
  %520 = vmatpush1.msra.mxu0 0.0
  %521 = vmatprep.subr.mxu0 0.0
  %522 = vmatpush1.msra.mxu0 0.0
  %523 = vmatprep.subr.mxu0 0.0
  %524 = vmatpush1.msra.mxu0 0.0
  %525 = vmatprep.subr.mxu0 0.0
  %526 = vmatpush1.msra.mxu0 0.0
  %527 = vmatprep.subr.mxu0 0.0
  %528 = vmatpush1.msra.mxu0 0.0
  %529 = vmatprep.subr.mxu0 0.0
  %530 = vmatpush1.msra.mxu0 0.0
  %531 = vmatprep.subr.mxu0 0.0
  %532 = vmatpush1.msra.mxu0 0.0
  %533 = vmatprep.subr.mxu0 0.0
  %534 = vmatpush1.msra.mxu0 0.0
  %535 = vmatprep.subr.mxu0 0.0
  %536 = vmatpush1.msra.mxu0 0.0
  %537 = vmatprep.subr.mxu0 0.0
  %538 = vmatpush1.msra.mxu0 0.0
  %539 = vmatprep.subr.mxu0 0.0
  %540 = vmatpush1.msra.mxu0 0.0
  %541 = vmatprep.subr.mxu0 0.0
  %542 = vmatpush1.msra.mxu0 0.0
  %543 = vmatprep.mubr.f32.mxu0 0.0
  %544 = vmatmul.mubr.f32.gmra.mrb[0].mxu0 0.0
  %v545 = vpop.f32.mrb[0].mxu0
  %v546 = vadd.f32 0.0, %v545
  %v547 = vpop.f32.mrb[0].mxu0
  %v548 = vadd.f32 0.0, %v547
  %549 = vdwg.mxu0
  %v550 = vadd.f32 %v340, %v475
  %v551 = vadd.f32 %v341, %v477
  %v552 = vadd.f32 %v342, %v546
  %v553 = vadd.f32 %v343, %v548
  %v554 = vxor.u32 %v550, 2147483648
  %v555 = vmul.f32 %v554, 1.442695
  %v556 = vpow.pop %v555
  %v557 = vadd.f32 %v556, 1.0
  %v558 = vrcp.pop %v557
  %v559 = vmul.f32 1.0, %v558
  %v560 = vxor.u32 %v551, 2147483648
  %v561 = vmul.f32 %v560, 1.442695
  %v562 = vpow.pop %v561
  %v563 = vadd.f32 %v562, 1.0
  %v564 = vrcp.pop %v563
  %v565 = vmul.f32 1.0, %v564
  %v566 = vtanh.pop %v552
  %v567 = vxor.u32 %v553, 2147483648
  %v568 = vmul.f32 %v567, 1.442695
  %v569 = vpow.pop %v568
  %v570 = vadd.f32 %v569, 1.0
  %v571 = vrcp.pop %v570
  %v572 = vmul.f32 1.0, %v571
  %v573 = vmul.f32 %v565, 0.0
  %v574 = vmul.f32 %v559, %v566
  %v575 = vadd.f32 %v573, %v574
  %v576 = vtanh.pop %v575
  %v577 = vmul.f32 %v572, %v576
  %578 = vst [vmem:[#allocation3] sm:$0xff] %v577
  %v579 = vld [vmem:[#allocation2 + $0x20] sm:$0xff]
  %v580 = vld [vmem:[#allocation2 + $0x28] sm:$0xff]
  %v581 = vld [vmem:[#allocation2 + $0x30] sm:$0xff]
  %v582 = vld [vmem:[#allocation2 + $0x38] sm:$0xff]
  %v583 = vld [vmem:[%s2] sm:$0xff]
  %v584 = vld [vmem:[%s2 + $0x8] sm:$0xff]
  %v585 = vld [vmem:[%s2 + $0x10] sm:$0xff]
  %v586 = vld [vmem:[%s2 + $0x18] sm:$0xff]
  %v587 = vld [vmem:[%s2 + $0x20] sm:$0xff]
  %v588 = vld [vmem:[%s2 + $0x28] sm:$0xff]
  %v589 = vld [vmem:[%s2 + $0x30] sm:$0xff]
  %v590 = vld [vmem:[%s2 + $0x38] sm:$0xff]
  %v591 = vld [vmem:[%s2 + $0x40] sm:$0xff]
  %v592 = vld [vmem:[%s2 + $0x48] sm:$0xff]
  %v593 = vld [vmem:[%s2 + $0x50] sm:$0xff]
  %v594 = vld [vmem:[%s2 + $0x58] sm:$0xff]
  %v595 = vld [vmem:[%s2 + $0x60] sm:$0xff]
  %v596 = vld [vmem:[%s2 + $0x68] sm:$0xff]
  %v597 = vld [vmem:[%s2 + $0x70] sm:$0xff]
  %v598 = vld [vmem:[%s2 + $0x78] sm:$0xff]
  %v599 = vld [vmem:[%s2 + $0x80] sm:$0xff]
  %v600 = vld [vmem:[%s2 + $0x88] sm:$0xff]
  %v601 = vld [vmem:[%s2 + $0x90] sm:$0xff]
  %v602 = vld [vmem:[%s2 + $0x98] sm:$0xff]
  %v603 = vld [vmem:[%s2 + $0xa0] sm:$0xff]
  %v604 = vld [vmem:[%s2 + $0xa8] sm:$0xff]
  %v605 = vld [vmem:[%s2 + $0xb0] sm:$0xff]
  %v606 = vld [vmem:[%s2 + $0xb8] sm:$0xff]
  %v607 = vld [vmem:[%s2 + $0xc0] sm:$0xff]
  %v608 = vld [vmem:[%s2 + $0xc8] sm:$0xff]
  %v609 = vld [vmem:[%s2 + $0xd0] sm:$0xff]
  %v610 = vld [vmem:[%s2 + $0xd8] sm:$0xff]
  %v611 = vld [vmem:[%s2 + $0xe0] sm:$0xff]
  %v612 = vld [vmem:[%s2 + $0xe8] sm:$0xff]
  %v613 = vld [vmem:[%s2 + $0xf0] sm:$0xff]
  %v614 = vld [vmem:[%s2 + $0xf8] sm:$0xff]
  %v615 = vld [vmem:[%s2 + $0x100] sm:$0xff]
  %v616 = vld [vmem:[%s2 + $0x108] sm:$0xff]
  %v617 = vld [vmem:[%s2 + $0x110] sm:$0xff]
  %v618 = vld [vmem:[%s2 + $0x118] sm:$0xff]
  %v619 = vld [vmem:[%s2 + $0x120] sm:$0xff]
  %v620 = vld [vmem:[%s2 + $0x128] sm:$0xff]
  %v621 = vld [vmem:[%s2 + $0x130] sm:$0xff]
  %v622 = vld [vmem:[%s2 + $0x138] sm:$0xff]
  %v623 = vld [vmem:[%s2 + $0x140] sm:$0xff]
  %v624 = vld [vmem:[%s2 + $0x148] sm:$0xff]
  %v625 = vld [vmem:[%s2 + $0x150] sm:$0xff]
  %v626 = vld [vmem:[%s2 + $0x158] sm:$0xff]
  %v627 = vld [vmem:[%s2 + $0x160] sm:$0xff]
  %v628 = vld [vmem:[%s2 + $0x168] sm:$0xff]
  %v629 = vld [vmem:[%s2 + $0x170] sm:$0xff]
  %v630 = vld [vmem:[%s2 + $0x178] sm:$0xff]
  %v631 = vld [vmem:[%s2 + $0x180] sm:$0xff]
  %v632 = vld [vmem:[%s2 + $0x188] sm:$0xff]
  %v633 = vld [vmem:[%s2 + $0x190] sm:$0xff]
  %v634 = vld [vmem:[%s2 + $0x198] sm:$0xff]
  %v635 = vld [vmem:[%s2 + $0x1a0] sm:$0xff]
  %v636 = vld [vmem:[%s2 + $0x1a8] sm:$0xff]
  %v637 = vld [vmem:[%s2 + $0x1b0] sm:$0xff]
  %v638 = vld [vmem:[%s2 + $0x1b8] sm:$0xff]
  %v639 = vld [vmem:[%s2 + $0x1c0] sm:$0xff]
  %v640 = vld [vmem:[%s2 + $0x1c8] sm:$0xff]
  %v641 = vld [vmem:[%s2 + $0x1d0] sm:$0xff]
  %v642 = vld [vmem:[%s2 + $0x1d8] sm:$0xff]
  %v643 = vld [vmem:[%s2 + $0x1e0] sm:$0xff]
  %v644 = vld [vmem:[%s2 + $0x1e8] sm:$0xff]
  %v645 = vld [vmem:[%s2 + $0x1f0] sm:$0xff]
  %v646 = vld [vmem:[%s2 + $0x1f8] sm:$0xff]
  %647 = vmatprep.subr.mxu0 %v584
  %648 = vmatpush1.msra.mxu0 %v583
  %649 = vmatprep.subr.mxu0 %v588
  %650 = vmatpush1.msra.mxu0 %v587
  %651 = vmatprep.subr.mxu0 %v592
  %652 = vmatpush1.msra.mxu0 %v591
  %653 = vmatprep.subr.mxu0 %v596
  %654 = vmatpush1.msra.mxu0 %v595
  %655 = vmatprep.subr.mxu0 %v600
  %656 = vmatpush1.msra.mxu0 %v599
  %657 = vmatprep.subr.mxu0 %v604
  %658 = vmatpush1.msra.mxu0 %v603
  %659 = vmatprep.subr.mxu0 %v608
  %660 = vmatpush1.msra.mxu0 %v607
  %661 = vmatprep.subr.mxu0 %v612
  %662 = vmatpush1.msra.mxu0 %v611
  %663 = vmatprep.subr.mxu0 %v616
  %664 = vmatpush1.msra.mxu0 %v615
  %665 = vmatprep.subr.mxu0 %v620
  %666 = vmatpush1.msra.mxu0 %v619
  %667 = vmatprep.subr.mxu0 %v624
  %668 = vmatpush1.msra.mxu0 %v623
  %669 = vmatprep.subr.mxu0 %v628
  %670 = vmatpush1.msra.mxu0 %v627
  %671 = vmatprep.subr.mxu0 %v632
  %672 = vmatpush1.msra.mxu0 %v631
  %673 = vmatprep.subr.mxu0 %v636
  %674 = vmatpush1.msra.mxu0 %v635
  %675 = vmatprep.subr.mxu0 %v640
  %676 = vmatpush1.msra.mxu0 %v639
  %677 = vmatprep.subr.mxu0 %v644
  %678 = vmatpush1.msra.mxu0 %v643
  %679 = vmatprep.subr.mxu0 0.0
  %680 = vmatpush1.msra.mxu0 0.0
  %681 = vmatprep.subr.mxu0 0.0
  %682 = vmatpush1.msra.mxu0 0.0
  %683 = vmatprep.subr.mxu0 0.0
  %684 = vmatpush1.msra.mxu0 0.0
  %685 = vmatprep.subr.mxu0 0.0
  %686 = vmatpush1.msra.mxu0 0.0
  %687 = vmatprep.subr.mxu0 0.0
  %688 = vmatpush1.msra.mxu0 0.0
  %689 = vmatprep.subr.mxu0 0.0
  %690 = vmatpush1.msra.mxu0 0.0
  %691 = vmatprep.subr.mxu0 0.0
  %692 = vmatpush1.msra.mxu0 0.0
  %693 = vmatprep.subr.mxu0 0.0
  %694 = vmatpush1.msra.mxu0 0.0
  %695 = vmatprep.subr.mxu0 0.0
  %696 = vmatpush1.msra.mxu0 0.0
  %697 = vmatprep.subr.mxu0 0.0
  %698 = vmatpush1.msra.mxu0 0.0
  %699 = vmatprep.subr.mxu0 0.0
  %700 = vmatpush1.msra.mxu0 0.0
  %701 = vmatprep.subr.mxu0 0.0
  %702 = vmatpush1.msra.mxu0 0.0
  %703 = vmatprep.subr.mxu0 0.0
  %704 = vmatpush1.msra.mxu0 0.0
  %705 = vmatprep.subr.mxu0 0.0
  %706 = vmatpush1.msra.mxu0 0.0
  %707 = vmatprep.subr.mxu0 0.0
  %708 = vmatpush1.msra.mxu0 0.0
  %709 = vmatprep.subr.mxu0 0.0
  %710 = vmatpush1.msra.mxu0 0.0
  %711 = vmatprep.mubr.f32.mxu0 0.0
  %712 = vmatmul.mubr.f32.gmra.mrb[0].mxu0 %v577
  %v713 = vpop.f32.mrb[0].mxu0
  %v714 = vadd.f32 0.0, %v713
  %v715 = vpop.f32.mrb[0].mxu0
  %v716 = vadd.f32 0.0, %v715
  %717 = vdwg.mxu0
  %718 = vmatprep.subr.mxu0 %v586
  %719 = vmatpush1.msra.mxu0 %v585
  %720 = vmatprep.subr.mxu0 %v590
  %721 = vmatpush1.msra.mxu0 %v589
  %722 = vmatprep.subr.mxu0 %v594
  %723 = vmatpush1.msra.mxu0 %v593
  %724 = vmatprep.subr.mxu0 %v598
  %725 = vmatpush1.msra.mxu0 %v597
  %726 = vmatprep.subr.mxu0 %v602
  %727 = vmatpush1.msra.mxu0 %v601
  %728 = vmatprep.subr.mxu0 %v606
  %729 = vmatpush1.msra.mxu0 %v605
  %730 = vmatprep.subr.mxu0 %v610
  %731 = vmatpush1.msra.mxu0 %v609
  %732 = vmatprep.subr.mxu0 %v614
  %733 = vmatpush1.msra.mxu0 %v613
  %734 = vmatprep.subr.mxu0 %v618
  %735 = vmatpush1.msra.mxu0 %v617
  %736 = vmatprep.subr.mxu0 %v622
  %737 = vmatpush1.msra.mxu0 %v621
  %738 = vmatprep.subr.mxu0 %v626
  %739 = vmatpush1.msra.mxu0 %v625
  %740 = vmatprep.subr.mxu0 %v630
  %741 = vmatpush1.msra.mxu0 %v629
  %742 = vmatprep.subr.mxu0 %v634
  %743 = vmatpush1.msra.mxu0 %v633
  %744 = vmatprep.subr.mxu0 %v638
  %745 = vmatpush1.msra.mxu0 %v637
  %746 = vmatprep.subr.mxu0 %v642
  %747 = vmatpush1.msra.mxu0 %v641
  %748 = vmatprep.subr.mxu0 %v646
  %749 = vmatpush1.msra.mxu0 %v645
  %750 = vmatprep.subr.mxu0 0.0
  %751 = vmatpush1.msra.mxu0 0.0
  %752 = vmatprep.subr.mxu0 0.0
  %753 = vmatpush1.msra.mxu0 0.0
  %754 = vmatprep.subr.mxu0 0.0
  %755 = vmatpush1.msra.mxu0 0.0
  %756 = vmatprep.subr.mxu0 0.0
  %757 = vmatpush1.msra.mxu0 0.0
  %758 = vmatprep.subr.mxu0 0.0
  %759 = vmatpush1.msra.mxu0 0.0
  %760 = vmatprep.subr.mxu0 0.0
  %761 = vmatpush1.msra.mxu0 0.0
  %762 = vmatprep.subr.mxu0 0.0
  %763 = vmatpush1.msra.mxu0 0.0
  %764 = vmatprep.subr.mxu0 0.0
  %765 = vmatpush1.msra.mxu0 0.0
  %766 = vmatprep.subr.mxu0 0.0
  %767 = vmatpush1.msra.mxu0 0.0
  %768 = vmatprep.subr.mxu0 0.0
  %769 = vmatpush1.msra.mxu0 0.0
  %770 = vmatprep.subr.mxu0 0.0
  %771 = vmatpush1.msra.mxu0 0.0
  %772 = vmatprep.subr.mxu0 0.0
  %773 = vmatpush1.msra.mxu0 0.0
  %774 = vmatprep.subr.mxu0 0.0
  %775 = vmatpush1.msra.mxu0 0.0
  %776 = vmatprep.subr.mxu0 0.0
  %777 = vmatpush1.msra.mxu0 0.0
  %778 = vmatprep.subr.mxu0 0.0
  %779 = vmatpush1.msra.mxu0 0.0
  %780 = vmatprep.subr.mxu0 0.0
  %781 = vmatpush1.msra.mxu0 0.0
  %782 = vmatprep.mubr.f32.mxu0 0.0
  %783 = vmatmul.mubr.f32.gmra.mrb[0].mxu0 %v577
  %v784 = vpop.f32.mrb[0].mxu0
  %v785 = vadd.f32 0.0, %v784
  %v786 = vpop.f32.mrb[0].mxu0
  %v787 = vadd.f32 0.0, %v786
  %788 = vdwg.mxu0
  %v789 = vadd.f32 %v579, %v714
  %v790 = vadd.f32 %v580, %v716
  %v791 = vadd.f32 %v581, %v785
  %v792 = vadd.f32 %v582, %v787
  %v793 = vxor.u32 %v789, 2147483648
  %v794 = vmul.f32 %v793, 1.442695
  %v795 = vpow.pop %v794
  %v796 = vadd.f32 %v795, 1.0
  %v797 = vrcp.pop %v796
  %v798 = vmul.f32 1.0, %v797
  %v799 = vxor.u32 %v790, 2147483648
  %v800 = vmul.f32 %v799, 1.442695
  %v801 = vpow.pop %v800
  %v802 = vadd.f32 %v801, 1.0
  %v803 = vrcp.pop %v802
  %v804 = vmul.f32 1.0, %v803
  %v805 = vtanh.pop %v791
  %v806 = vxor.u32 %v792, 2147483648
  %v807 = vmul.f32 %v806, 1.442695
  %v808 = vpow.pop %v807
  %v809 = vadd.f32 %v808, 1.0
  %v810 = vrcp.pop %v809
  %v811 = vmul.f32 1.0, %v810
  %v812 = vmul.f32 %v804, %v575
  %v813 = vmul.f32 %v798, %v805
  %v814 = vadd.f32 %v812, %v813
  %v815 = vtanh.pop %v814
  %v816 = vmul.f32 %v811, %v815
  %817 = vst [vmem:[#allocation3 + $0x8] sm:$0xff] %v816
  %v818 = vld [vmem:[#allocation2 + $0x40] sm:$0xff]
  %v819 = vld [vmem:[#allocation2 + $0x48] sm:$0xff]
  %v820 = vld [vmem:[#allocation2 + $0x50] sm:$0xff]
  %v821 = vld [vmem:[#allocation2 + $0x58] sm:$0xff]
  %v822 = vld [vmem:[%s2] sm:$0xff]
  %v823 = vld [vmem:[%s2 + $0x8] sm:$0xff]
  %v824 = vld [vmem:[%s2 + $0x10] sm:$0xff]
  %v825 = vld [vmem:[%s2 + $0x18] sm:$0xff]
  %v826 = vld [vmem:[%s2 + $0x20] sm:$0xff]
  %v827 = vld [vmem:[%s2 + $0x28] sm:$0xff]
  %v828 = vld [vmem:[%s2 + $0x30] sm:$0xff]
  %v829 = vld [vmem:[%s2 + $0x38] sm:$0xff]
  %v830 = vld [vmem:[%s2 + $0x40] sm:$0xff]
  %v831 = vld [vmem:[%s2 + $0x48] sm:$0xff]
  %v832 = vld [vmem:[%s2 + $0x50] sm:$0xff]
  %v833 = vld [vmem:[%s2 + $0x58] sm:$0xff]
  %v834 = vld [vmem:[%s2 + $0x60] sm:$0xff]
  %v835 = vld [vmem:[%s2 + $0x68] sm:$0xff]
  %v836 = vld [vmem:[%s2 + $0x70] sm:$0xff]
  %v837 = vld [vmem:[%s2 + $0x78] sm:$0xff]
  %v838 = vld [vmem:[%s2 + $0x80] sm:$0xff]
  %v839 = vld [vmem:[%s2 + $0x88] sm:$0xff]
  %v840 = vld [vmem:[%s2 + $0x90] sm:$0xff]
  %v841 = vld [vmem:[%s2 + $0x98] sm:$0xff]
  %v842 = vld [vmem:[%s2 + $0xa0] sm:$0xff]
  %v843 = vld [vmem:[%s2 + $0xa8] sm:$0xff]
  %v844 = vld [vmem:[%s2 + $0xb0] sm:$0xff]
  %v845 = vld [vmem:[%s2 + $0xb8] sm:$0xff]
  %v846 = vld [vmem:[%s2 + $0xc0] sm:$0xff]
  %v847 = vld [vmem:[%s2 + $0xc8] sm:$0xff]
  %v848 = vld [vmem:[%s2 + $0xd0] sm:$0xff]
  %v849 = vld [vmem:[%s2 + $0xd8] sm:$0xff]
  %v850 = vld [vmem:[%s2 + $0xe0] sm:$0xff]
  %v851 = vld [vmem:[%s2 + $0xe8] sm:$0xff]
  %v852 = vld [vmem:[%s2 + $0xf0] sm:$0xff]
  %v853 = vld [vmem:[%s2 + $0xf8] sm:$0xff]
  %v854 = vld [vmem:[%s2 + $0x100] sm:$0xff]
  %v855 = vld [vmem:[%s2 + $0x108] sm:$0xff]
  %v856 = vld [vmem:[%s2 + $0x110] sm:$0xff]
  %v857 = vld [vmem:[%s2 + $0x118] sm:$0xff]
  %v858 = vld [vmem:[%s2 + $0x120] sm:$0xff]
  %v859 = vld [vmem:[%s2 + $0x128] sm:$0xff]
  %v860 = vld [vmem:[%s2 + $0x130] sm:$0xff]
  %v861 = vld [vmem:[%s2 + $0x138] sm:$0xff]
  %v862 = vld [vmem:[%s2 + $0x140] sm:$0xff]
  %v863 = vld [vmem:[%s2 + $0x148] sm:$0xff]
  %v864 = vld [vmem:[%s2 + $0x150] sm:$0xff]
  %v865 = vld [vmem:[%s2 + $0x158] sm:$0xff]
  %v866 = vld [vmem:[%s2 + $0x160] sm:$0xff]
  %v867 = vld [vmem:[%s2 + $0x168] sm:$0xff]
  %v868 = vld [vmem:[%s2 + $0x170] sm:$0xff]
  %v869 = vld [vmem:[%s2 + $0x178] sm:$0xff]
  %v870 = vld [vmem:[%s2 + $0x180] sm:$0xff]
  %v871 = vld [vmem:[%s2 + $0x188] sm:$0xff]
  %v872 = vld [vmem:[%s2 + $0x190] sm:$0xff]
  %v873 = vld [vmem:[%s2 + $0x198] sm:$0xff]
  %v874 = vld [vmem:[%s2 + $0x1a0] sm:$0xff]
  %v875 = vld [vmem:[%s2 + $0x1a8] sm:$0xff]
  %v876 = vld [vmem:[%s2 + $0x1b0] sm:$0xff]
  %v877 = vld [vmem:[%s2 + $0x1b8] sm:$0xff]
  %v878 = vld [vmem:[%s2 + $0x1c0] sm:$0xff]
  %v879 = vld [vmem:[%s2 + $0x1c8] sm:$0xff]
  %v880 = vld [vmem:[%s2 + $0x1d0] sm:$0xff]
  %v881 = vld [vmem:[%s2 + $0x1d8] sm:$0xff]
  %v882 = vld [vmem:[%s2 + $0x1e0] sm:$0xff]
  %v883 = vld [vmem:[%s2 + $0x1e8] sm:$0xff]
  %v884 = vld [vmem:[%s2 + $0x1f0] sm:$0xff]
  %v885 = vld [vmem:[%s2 + $0x1f8] sm:$0xff]
  %886 = vmatprep.subr.mxu0 %v823
  %887 = vmatpush1.msra.mxu0 %v822
  %888 = vmatprep.subr.mxu0 %v827
  %889 = vmatpush1.msra.mxu0 %v826
  %890 = vmatprep.subr.mxu0 %v831
  %891 = vmatpush1.msra.mxu0 %v830
  %892 = vmatprep.subr.mxu0 %v835
  %893 = vmatpush1.msra.mxu0 %v834
  %894 = vmatprep.subr.mxu0 %v839
  %895 = vmatpush1.msra.mxu0 %v838
  %896 = vmatprep.subr.mxu0 %v843
  %897 = vmatpush1.msra.mxu0 %v842
  %898 = vmatprep.subr.mxu0 %v847
  %899 = vmatpush1.msra.mxu0 %v846
  %900 = vmatprep.subr.mxu0 %v851
  %901 = vmatpush1.msra.mxu0 %v850
  %902 = vmatprep.subr.mxu0 %v855
  %903 = vmatpush1.msra.mxu0 %v854
  %904 = vmatprep.subr.mxu0 %v859
  %905 = vmatpush1.msra.mxu0 %v858
  %906 = vmatprep.subr.mxu0 %v863
  %907 = vmatpush1.msra.mxu0 %v862
  %908 = vmatprep.subr.mxu0 %v867
  %909 = vmatpush1.msra.mxu0 %v866
  %910 = vmatprep.subr.mxu0 %v871
  %911 = vmatpush1.msra.mxu0 %v870
  %912 = vmatprep.subr.mxu0 %v875
  %913 = vmatpush1.msra.mxu0 %v874
  %914 = vmatprep.subr.mxu0 %v879
  %915 = vmatpush1.msra.mxu0 %v878
  %916 = vmatprep.subr.mxu0 %v883
  %917 = vmatpush1.msra.mxu0 %v882
  %918 = vmatprep.subr.mxu0 0.0
  %919 = vmatpush1.msra.mxu0 0.0
  %920 = vmatprep.subr.mxu0 0.0
  %921 = vmatpush1.msra.mxu0 0.0
  %922 = vmatprep.subr.mxu0 0.0
  %923 = vmatpush1.msra.mxu0 0.0
  %924 = vmatprep.subr.mxu0 0.0
  %925 = vmatpush1.msra.mxu0 0.0
  %926 = vmatprep.subr.mxu0 0.0
  %927 = vmatpush1.msra.mxu0 0.0
  %928 = vmatprep.subr.mxu0 0.0
  %929 = vmatpush1.msra.mxu0 0.0
  %930 = vmatprep.subr.mxu0 0.0
  %931 = vmatpush1.msra.mxu0 0.0
  %932 = vmatprep.subr.mxu0 0.0
  %933 = vmatpush1.msra.mxu0 0.0
  %934 = vmatprep.subr.mxu0 0.0
  %935 = vmatpush1.msra.mxu0 0.0
  %936 = vmatprep.subr.mxu0 0.0
  %937 = vmatpush1.msra.mxu0 0.0
  %938 = vmatprep.subr.mxu0 0.0
  %939 = vmatpush1.msra.mxu0 0.0
  %940 = vmatprep.subr.mxu0 0.0
  %941 = vmatpush1.msra.mxu0 0.0
  %942 = vmatprep.subr.mxu0 0.0
  %943 = vmatpush1.msra.mxu0 0.0
  %944 = vmatprep.subr.mxu0 0.0
  %945 = vmatpush1.msra.mxu0 0.0
  %946 = vmatprep.subr.mxu0 0.0
  %947 = vmatpush1.msra.mxu0 0.0
  %948 = vmatprep.subr.mxu0 0.0
  %949 = vmatpush1.msra.mxu0 0.0
  %950 = vmatprep.mubr.f32.mxu0 0.0
  %951 = vmatmul.mubr.f32.gmra.mrb[0].mxu0 %v816
  %v952 = vpop.f32.mrb[0].mxu0
  %v953 = vadd.f32 0.0, %v952
  %v954 = vpop.f32.mrb[0].mxu0
  %v955 = vadd.f32 0.0, %v954
  %956 = vdwg.mxu0
  %957 = vmatprep.subr.mxu0 %v825
  %958 = vmatpush1.msra.mxu0 %v824
  %959 = vmatprep.subr.mxu0 %v829
  %960 = vmatpush1.msra.mxu0 %v828
  %961 = vmatprep.subr.mxu0 %v833
  %962 = vmatpush1.msra.mxu0 %v832
  %963 = vmatprep.subr.mxu0 %v837
  %964 = vmatpush1.msra.mxu0 %v836
  %965 = vmatprep.subr.mxu0 %v841
  %966 = vmatpush1.msra.mxu0 %v840
  %967 = vmatprep.subr.mxu0 %v845
  %968 = vmatpush1.msra.mxu0 %v844
  %969 = vmatprep.subr.mxu0 %v849
  %970 = vmatpush1.msra.mxu0 %v848
  %971 = vmatprep.subr.mxu0 %v853
  %972 = vmatpush1.msra.mxu0 %v852
  %973 = vmatprep.subr.mxu0 %v857
  %974 = vmatpush1.msra.mxu0 %v856
  %975 = vmatprep.subr.mxu0 %v861
  %976 = vmatpush1.msra.mxu0 %v860
  %977 = vmatprep.subr.mxu0 %v865
  %978 = vmatpush1.msra.mxu0 %v864
  %979 = vmatprep.subr.mxu0 %v869
  %980 = vmatpush1.msra.mxu0 %v868
  %981 = vmatprep.subr.mxu0 %v873
  %982 = vmatpush1.msra.mxu0 %v872
  %983 = vmatprep.subr.mxu0 %v877
  %984 = vmatpush1.msra.mxu0 %v876
  %985 = vmatprep.subr.mxu0 %v881
  %986 = vmatpush1.msra.mxu0 %v880
  %987 = vmatprep.subr.mxu0 %v885
  %988 = vmatpush1.msra.mxu0 %v884
  %989 = vmatprep.subr.mxu0 0.0
  %990 = vmatpush1.msra.mxu0 0.0
  %991 = vmatprep.subr.mxu0 0.0
  %992 = vmatpush1.msra.mxu0 0.0
  %993 = vmatprep.subr.mxu0 0.0
  %994 = vmatpush1.msra.mxu0 0.0
  %995 = vmatprep.subr.mxu0 0.0
  %996 = vmatpush1.msra.mxu0 0.0
  %997 = vmatprep.subr.mxu0 0.0
  %998 = vmatpush1.msra.mxu0 0.0
  %999 = vmatprep.subr.mxu0 0.0
  %1000 = vmatpush1.msra.mxu0 0.0
  %1001 = vmatprep.subr.mxu0 0.0
  %1002 = vmatpush1.msra.mxu0 0.0
  %1003 = vmatprep.subr.mxu0 0.0
  %1004 = vmatpush1.msra.mxu0 0.0
  %1005 = vmatprep.subr.mxu0 0.0
  %1006 = vmatpush1.msra.mxu0 0.0
  %1007 = vmatprep.subr.mxu0 0.0
  %1008 = vmatpush1.msra.mxu0 0.0
  %1009 = vmatprep.subr.mxu0 0.0
  %1010 = vmatpush1.msra.mxu0 0.0
  %1011 = vmatprep.subr.mxu0 0.0
  %1012 = vmatpush1.msra.mxu0 0.0
  %1013 = vmatprep.subr.mxu0 0.0
  %1014 = vmatpush1.msra.mxu0 0.0
  %1015 = vmatprep.subr.mxu0 0.0
  %1016 = vmatpush1.msra.mxu0 0.0
  %1017 = vmatprep.subr.mxu0 0.0
  %1018 = vmatpush1.msra.mxu0 0.0
  %1019 = vmatprep.subr.mxu0 0.0
  %1020 = vmatpush1.msra.mxu0 0.0
  %1021 = vmatprep.mubr.f32.mxu0 0.0
  %1022 = vmatmul.mubr.f32.gmra.mrb[0].mxu0 %v816
  %v1023 = vpop.f32.mrb[0].mxu0
  %v1024 = vadd.f32 0.0, %v1023
  %v1025 = vpop.f32.mrb[0].mxu0
  %v1026 = vadd.f32 0.0, %v1025
  %1027 = vdwg.mxu0
  %v1028 = vadd.f32 %v818, %v953
  %v1029 = vadd.f32 %v819, %v955
  %v1030 = vadd.f32 %v820, %v1024
  %v1031 = vadd.f32 %v821, %v1026
  %v1032 = vxor.u32 %v1028, 2147483648
  %v1033 = vmul.f32 %v1032, 1.442695
  %v1034 = vpow.pop %v1033
  %v1035 = vadd.f32 %v1034, 1.0
  %v1036 = vrcp.pop %v1035
  %v1037 = vmul.f32 1.0, %v1036
  %v1038 = vxor.u32 %v1029, 2147483648
  %v1039 = vmul.f32 %v1038, 1.442695
  %v1040 = vpow.pop %v1039
  %v1041 = vadd.f32 %v1040, 1.0
  %v1042 = vrcp.pop %v1041
  %v1043 = vmul.f32 1.0, %v1042
  %v1044 = vtanh.pop %v1030
  %v1045 = vxor.u32 %v1031, 2147483648
  %v1046 = vmul.f32 %v1045, 1.442695
  %v1047 = vpow.pop %v1046
  %v1048 = vadd.f32 %v1047, 1.0
  %v1049 = vrcp.pop %v1048
  %v1050 = vmul.f32 1.0, %v1049
  %v1051 = vmul.f32 %v1043, %v814
  %v1052 = vmul.f32 %v1037, %v1044
  %v1053 = vadd.f32 %v1051, %v1052
  %v1054 = vtanh.pop %v1053
  %v1055 = vmul.f32 %v1050, %v1054
  %1056 = vst [vmem:[#allocation3 + $0x10] sm:$0xff] %v1055
  %v1057 = vld [vmem:[#allocation2 + $0x60] sm:$0xff]
  %v1058 = vld [vmem:[#allocation2 + $0x68] sm:$0xff]
  %v1059 = vld [vmem:[#allocation2 + $0x70] sm:$0xff]
  %v1060 = vld [vmem:[#allocation2 + $0x78] sm:$0xff]
  %v1061 = vld [vmem:[%s2] sm:$0xff]
  %v1062 = vld [vmem:[%s2 + $0x8] sm:$0xff]
  %v1063 = vld [vmem:[%s2 + $0x10] sm:$0xff]
  %v1064 = vld [vmem:[%s2 + $0x18] sm:$0xff]
  %v1065 = vld [vmem:[%s2 + $0x20] sm:$0xff]
  %v1066 = vld [vmem:[%s2 + $0x28] sm:$0xff]
  %v1067 = vld [vmem:[%s2 + $0x30] sm:$0xff]
  %v1068 = vld [vmem:[%s2 + $0x38] sm:$0xff]
  %v1069 = vld [vmem:[%s2 + $0x40] sm:$0xff]
  %v1070 = vld [vmem:[%s2 + $0x48] sm:$0xff]
  %v1071 = vld [vmem:[%s2 + $0x50] sm:$0xff]
  %v1072 = vld [vmem:[%s2 + $0x58] sm:$0xff]
  %v1073 = vld [vmem:[%s2 + $0x60] sm:$0xff]
  %v1074 = vld [vmem:[%s2 + $0x68] sm:$0xff]
  %v1075 = vld [vmem:[%s2 + $0x70] sm:$0xff]
  %v1076 = vld [vmem:[%s2 + $0x78] sm:$0xff]
  %v1077 = vld [vmem:[%s2 + $0x80] sm:$0xff]
  %v1078 = vld [vmem:[%s2 + $0x88] sm:$0xff]
  %v1079 = vld [vmem:[%s2 + $0x90] sm:$0xff]
  %v1080 = vld [vmem:[%s2 + $0x98] sm:$0xff]
  %v1081 = vld [vmem:[%s2 + $0xa0] sm:$0xff]
  %v1082 = vld [vmem:[%s2 + $0xa8] sm:$0xff]
  %v1083 = vld [vmem:[%s2 + $0xb0] sm:$0xff]
  %v1084 = vld [vmem:[%s2 + $0xb8] sm:$0xff]
  %v1085 = vld [vmem:[%s2 + $0xc0] sm:$0xff]
  %v1086 = vld [vmem:[%s2 + $0xc8] sm:$0xff]
  %v1087 = vld [vmem:[%s2 + $0xd0] sm:$0xff]
  %v1088 = vld [vmem:[%s2 + $0xd8] sm:$0xff]
  %v1089 = vld [vmem:[%s2 + $0xe0] sm:$0xff]
  %v1090 = vld [vmem:[%s2 + $0xe8] sm:$0xff]
  %v1091 = vld [vmem:[%s2 + $0xf0] sm:$0xff]
  %v1092 = vld [vmem:[%s2 + $0xf8] sm:$0xff]
  %v1093 = vld [vmem:[%s2 + $0x100] sm:$0xff]
  %v1094 = vld [vmem:[%s2 + $0x108] sm:$0xff]
  %v1095 = vld [vmem:[%s2 + $0x110] sm:$0xff]
  %v1096 = vld [vmem:[%s2 + $0x118] sm:$0xff]
  %v1097 = vld [vmem:[%s2 + $0x120] sm:$0xff]
  %v1098 = vld [vmem:[%s2 + $0x128] sm:$0xff]
  %v1099 = vld [vmem:[%s2 + $0x130] sm:$0xff]
  %v1100 = vld [vmem:[%s2 + $0x138] sm:$0xff]
  %v1101 = vld [vmem:[%s2 + $0x140] sm:$0xff]
  %v1102 = vld [vmem:[%s2 + $0x148] sm:$0xff]
  %v1103 = vld [vmem:[%s2 + $0x150] sm:$0xff]
  %v1104 = vld [vmem:[%s2 + $0x158] sm:$0xff]
  %v1105 = vld [vmem:[%s2 + $0x160] sm:$0xff]
  %v1106 = vld [vmem:[%s2 + $0x168] sm:$0xff]
  %v1107 = vld [vmem:[%s2 + $0x170] sm:$0xff]
  %v1108 = vld [vmem:[%s2 + $0x178] sm:$0xff]
  %v1109 = vld [vmem:[%s2 + $0x180] sm:$0xff]
  %v1110 = vld [vmem:[%s2 + $0x188] sm:$0xff]
  %v1111 = vld [vmem:[%s2 + $0x190] sm:$0xff]
  %v1112 = vld [vmem:[%s2 + $0x198] sm:$0xff]
  %v1113 = vld [vmem:[%s2 + $0x1a0] sm:$0xff]
  %v1114 = vld [vmem:[%s2 + $0x1a8] sm:$0xff]
  %v1115 = vld [vmem:[%s2 + $0x1b0] sm:$0xff]
  %v1116 = vld [vmem:[%s2 + $0x1b8] sm:$0xff]
  %v1117 = vld [vmem:[%s2 + $0x1c0] sm:$0xff]
  %v1118 = vld [vmem:[%s2 + $0x1c8] sm:$0xff]
  %v1119 = vld [vmem:[%s2 + $0x1d0] sm:$0xff]
  %v1120 = vld [vmem:[%s2 + $0x1d8] sm:$0xff]
  %v1121 = vld [vmem:[%s2 + $0x1e0] sm:$0xff]
  %v1122 = vld [vmem:[%s2 + $0x1e8] sm:$0xff]
  %v1123 = vld [vmem:[%s2 + $0x1f0] sm:$0xff]
  %v1124 = vld [vmem:[%s2 + $0x1f8] sm:$0xff]
  %1125 = vmatprep.subr.mxu0 %v1062
  %1126 = vmatpush1.msra.mxu0 %v1061
  %1127 = vmatprep.subr.mxu0 %v1066
  %1128 = vmatpush1.msra.mxu0 %v1065
  %1129 = vmatprep.subr.mxu0 %v1070
  %1130 = vmatpush1.msra.mxu0 %v1069
  %1131 = vmatprep.subr.mxu0 %v1074
  %1132 = vmatpush1.msra.mxu0 %v1073
  %1133 = vmatprep.subr.mxu0 %v1078
  %1134 = vmatpush1.msra.mxu0 %v1077
  %1135 = vmatprep.subr.mxu0 %v1082
  %1136 = vmatpush1.msra.mxu0 %v1081
  %1137 = vmatprep.subr.mxu0 %v1086
  %1138 = vmatpush1.msra.mxu0 %v1085
  %1139 = vmatprep.subr.mxu0 %v1090
  %1140 = vmatpush1.msra.mxu0 %v1089
  %1141 = vmatprep.subr.mxu0 %v1094
  %1142 = vmatpush1.msra.mxu0 %v1093
  %1143 = vmatprep.subr.mxu0 %v1098
  %1144 = vmatpush1.msra.mxu0 %v1097
  %1145 = vmatprep.subr.mxu0 %v1102
  %1146 = vmatpush1.msra.mxu0 %v1101
  %1147 = vmatprep.subr.mxu0 %v1106
  %1148 = vmatpush1.msra.mxu0 %v1105
  %1149 = vmatprep.subr.mxu0 %v1110
  %1150 = vmatpush1.msra.mxu0 %v1109
  %1151 = vmatprep.subr.mxu0 %v1114
  %1152 = vmatpush1.msra.mxu0 %v1113
  %1153 = vmatprep.subr.mxu0 %v1118
  %1154 = vmatpush1.msra.mxu0 %v1117
  %1155 = vmatprep.subr.mxu0 %v1122
  %1156 = vmatpush1.msra.mxu0 %v1121
  %1157 = vmatprep.subr.mxu0 0.0
  %1158 = vmatpush1.msra.mxu0 0.0
  %1159 = vmatprep.subr.mxu0 0.0
  %1160 = vmatpush1.msra.mxu0 0.0
  %1161 = vmatprep.subr.mxu0 0.0
  %1162 = vmatpush1.msra.mxu0 0.0
  %1163 = vmatprep.subr.mxu0 0.0
  %1164 = vmatpush1.msra.mxu0 0.0
  %1165 = vmatprep.subr.mxu0 0.0
  %1166 = vmatpush1.msra.mxu0 0.0
  %1167 = vmatprep.subr.mxu0 0.0
  %1168 = vmatpush1.msra.mxu0 0.0
  %1169 = vmatprep.subr.mxu0 0.0
  %1170 = vmatpush1.msra.mxu0 0.0
  %1171 = vmatprep.subr.mxu0 0.0
  %1172 = vmatpush1.msra.mxu0 0.0
  %1173 = vmatprep.subr.mxu0 0.0
  %1174 = vmatpush1.msra.mxu0 0.0
  %1175 = vmatprep.subr.mxu0 0.0
  %1176 = vmatpush1.msra.mxu0 0.0
  %1177 = vmatprep.subr.mxu0 0.0
  %1178 = vmatpush1.msra.mxu0 0.0
  %1179 = vmatprep.subr.mxu0 0.0
  %1180 = vmatpush1.msra.mxu0 0.0
  %1181 = vmatprep.subr.mxu0 0.0
  %1182 = vmatpush1.msra.mxu0 0.0
  %1183 = vmatprep.subr.mxu0 0.0
  %1184 = vmatpush1.msra.mxu0 0.0
  %1185 = vmatprep.subr.mxu0 0.0
  %1186 = vmatpush1.msra.mxu0 0.0
  %1187 = vmatprep.subr.mxu0 0.0
  %1188 = vmatpush1.msra.mxu0 0.0
  %1189 = vmatprep.mubr.f32.mxu0 0.0
  %1190 = vmatmul.mubr.f32.gmra.mrb[0].mxu0 %v1055
  %v1191 = vpop.f32.mrb[0].mxu0
  %v1192 = vadd.f32 0.0, %v1191
  %v1193 = vpop.f32.mrb[0].mxu0
  %v1194 = vadd.f32 0.0, %v1193
  %1195 = vdwg.mxu0
  %1196 = vmatprep.subr.mxu0 %v1064
  %1197 = vmatpush1.msra.mxu0 %v1063
  %1198 = vmatprep.subr.mxu0 %v1068
  %1199 = vmatpush1.msra.mxu0 %v1067
  %1200 = vmatprep.subr.mxu0 %v1072
  %1201 = vmatpush1.msra.mxu0 %v1071
  %1202 = vmatprep.subr.mxu0 %v1076
  %1203 = vmatpush1.msra.mxu0 %v1075
  %1204 = vmatprep.subr.mxu0 %v1080
  %1205 = vmatpush1.msra.mxu0 %v1079
  %1206 = vmatprep.subr.mxu0 %v1084
  %1207 = vmatpush1.msra.mxu0 %v1083
  %1208 = vmatprep.subr.mxu0 %v1088
  %1209 = vmatpush1.msra.mxu0 %v1087
  %1210 = vmatprep.subr.mxu0 %v1092
  %1211 = vmatpush1.msra.mxu0 %v1091
  %1212 = vmatprep.subr.mxu0 %v1096
  %1213 = vmatpush1.msra.mxu0 %v1095
  %1214 = vmatprep.subr.mxu0 %v1100
  %1215 = vmatpush1.msra.mxu0 %v1099
  %1216 = vmatprep.subr.mxu0 %v1104
  %1217 = vmatpush1.msra.mxu0 %v1103
  %1218 = vmatprep.subr.mxu0 %v1108
  %1219 = vmatpush1.msra.mxu0 %v1107
  %1220 = vmatprep.subr.mxu0 %v1112
  %1221 = vmatpush1.msra.mxu0 %v1111
  %1222 = vmatprep.subr.mxu0 %v1116
  %1223 = vmatpush1.msra.mxu0 %v1115
  %1224 = vmatprep.subr.mxu0 %v1120
  %1225 = vmatpush1.msra.mxu0 %v1119
  %1226 = vmatprep.subr.mxu0 %v1124
  %1227 = vmatpush1.msra.mxu0 %v1123
  %1228 = vmatprep.subr.mxu0 0.0
  %1229 = vmatpush1.msra.mxu0 0.0
  %1230 = vmatprep.subr.mxu0 0.0
  %1231 = vmatpush1.msra.mxu0 0.0
  %1232 = vmatprep.subr.mxu0 0.0
  %1233 = vmatpush1.msra.mxu0 0.0
  %1234 = vmatprep.subr.mxu0 0.0
  %1235 = vmatpush1.msra.mxu0 0.0
  %1236 = vmatprep.subr.mxu0 0.0
  %1237 = vmatpush1.msra.mxu0 0.0
  %1238 = vmatprep.subr.mxu0 0.0
  %1239 = vmatpush1.msra.mxu0 0.0
  %1240 = vmatprep.subr.mxu0 0.0
  %1241 = vmatpush1.msra.mxu0 0.0
  %1242 = vmatprep.subr.mxu0 0.0
  %1243 = vmatpush1.msra.mxu0 0.0
  %1244 = vmatprep.subr.mxu0 0.0
  %1245 = vmatpush1.msra.mxu0 0.0
  %1246 = vmatprep.subr.mxu0 0.0
  %1247 = vmatpush1.msra.mxu0 0.0
  %1248 = vmatprep.subr.mxu0 0.0
  %1249 = vmatpush1.msra.mxu0 0.0
  %1250 = vmatprep.subr.mxu0 0.0
  %1251 = vmatpush1.msra.mxu0 0.0
  %1252 = vmatprep.subr.mxu0 0.0
  %1253 = vmatpush1.msra.mxu0 0.0
  %1254 = vmatprep.subr.mxu0 0.0
  %1255 = vmatpush1.msra.mxu0 0.0
  %1256 = vmatprep.subr.mxu0 0.0
  %1257 = vmatpush1.msra.mxu0 0.0
  %1258 = vmatprep.subr.mxu0 0.0
  %1259 = vmatpush1.msra.mxu0 0.0
  %1260 = vmatprep.mubr.f32.mxu0 0.0
  %1261 = vmatmul.mubr.f32.gmra.mrb[0].mxu0 %v1055
  %v1262 = vpop.f32.mrb[0].mxu0
  %v1263 = vadd.f32 0.0, %v1262
  %v1264 = vpop.f32.mrb[0].mxu0
  %v1265 = vadd.f32 0.0, %v1264
  %1266 = vdwg.mxu0
  %v1267 = vadd.f32 %v1057, %v1192
  %v1268 = vadd.f32 %v1058, %v1194
  %v1269 = vadd.f32 %v1059, %v1263
  %v1270 = vadd.f32 %v1060, %v1265
  %v1271 = vxor.u32 %v1267, 2147483648
  %v1272 = vmul.f32 %v1271, 1.442695
  %v1273 = vpow.pop %v1272
  %v1274 = vadd.f32 %v1273, 1.0
  %v1275 = vrcp.pop %v1274
  %v1276 = vmul.f32 1.0, %v1275
  %v1277 = vxor.u32 %v1268, 2147483648
  %v1278 = vmul.f32 %v1277, 1.442695
  %v1279 = vpow.pop %v1278
  %v1280 = vadd.f32 %v1279, 1.0
  %v1281 = vrcp.pop %v1280
  %v1282 = vmul.f32 1.0, %v1281
  %v1283 = vtanh.pop %v1269
  %v1284 = vxor.u32 %v1270, 2147483648
  %v1285 = vmul.f32 %v1284, 1.442695
  %v1286 = vpow.pop %v1285
  %v1287 = vadd.f32 %v1286, 1.0
  %v1288 = vrcp.pop %v1287
  %v1289 = vmul.f32 1.0, %v1288
  %v1290 = vmul.f32 %v1282, %v1053
  %v1291 = vmul.f32 %v1276, %v1283
  %v1292 = vadd.f32 %v1290, %v1291
  %v1293 = vtanh.pop %v1292
  %v1294 = vmul.f32 %v1289, %v1293
  %1295 = vst [vmem:[#allocation3 + $0x18] sm:$0xff] %v1294
  %v1296 = vld [vmem:[#allocation2 + $0x80] sm:$0xff]
  %v1297 = vld [vmem:[#allocation2 + $0x88] sm:$0xff]
  %v1298 = vld [vmem:[#allocation2 + $0x90] sm:$0xff]
  %v1299 = vld [vmem:[#allocation2 + $0x98] sm:$0xff]
  %v1300 = vld [vmem:[%s2] sm:$0xff]
  %v1301 = vld [vmem:[%s2 + $0x8] sm:$0xff]
  %v1302 = vld [vmem:[%s2 + $0x10] sm:$0xff]
  %v1303 = vld [vmem:[%s2 + $0x18] sm:$0xff]
  %v1304 = vld [vmem:[%s2 + $0x20] sm:$0xff]
  %v1305 = vld [vmem:[%s2 + $0x28] sm:$0xff]
  %v1306 = vld [vmem:[%s2 + $0x30] sm:$0xff]
  %v1307 = vld [vmem:[%s2 + $0x38] sm:$0xff]
  %v1308 = vld [vmem:[%s2 + $0x40] sm:$0xff]
  %v1309 = vld [vmem:[%s2 + $0x48] sm:$0xff]
  %v1310 = vld [vmem:[%s2 + $0x50] sm:$0xff]
  %v1311 = vld [vmem:[%s2 + $0x58] sm:$0xff]
  %v1312 = vld [vmem:[%s2 + $0x60] sm:$0xff]
  %v1313 = vld [vmem:[%s2 + $0x68] sm:$0xff]
  %v1314 = vld [vmem:[%s2 + $0x70] sm:$0xff]
  %v1315 = vld [vmem:[%s2 + $0x78] sm:$0xff]
  %v1316 = vld [vmem:[%s2 + $0x80] sm:$0xff]
  %v1317 = vld [vmem:[%s2 + $0x88] sm:$0xff]
  %v1318 = vld [vmem:[%s2 + $0x90] sm:$0xff]
  %v1319 = vld [vmem:[%s2 + $0x98] sm:$0xff]
  %v1320 = vld [vmem:[%s2 + $0xa0] sm:$0xff]
  %v1321 = vld [vmem:[%s2 + $0xa8] sm:$0xff]
  %v1322 = vld [vmem:[%s2 + $0xb0] sm:$0xff]
  %v1323 = vld [vmem:[%s2 + $0xb8] sm:$0xff]
  %v1324 = vld [vmem:[%s2 + $0xc0] sm:$0xff]
  %v1325 = vld [vmem:[%s2 + $0xc8] sm:$0xff]
  %v1326 = vld [vmem:[%s2 + $0xd0] sm:$0xff]
  %v1327 = vld [vmem:[%s2 + $0xd8] sm:$0xff]
  %v1328 = vld [vmem:[%s2 + $0xe0] sm:$0xff]
  %v1329 = vld [vmem:[%s2 + $0xe8] sm:$0xff]
  %v1330 = vld [vmem:[%s2 + $0xf0] sm:$0xff]
  %v1331 = vld [vmem:[%s2 + $0xf8] sm:$0xff]
  %v1332 = vld [vmem:[%s2 + $0x100] sm:$0xff]
  %v1333 = vld [vmem:[%s2 + $0x108] sm:$0xff]
  %v1334 = vld [vmem:[%s2 + $0x110] sm:$0xff]
  %v1335 = vld [vmem:[%s2 + $0x118] sm:$0xff]
  %v1336 = vld [vmem:[%s2 + $0x120] sm:$0xff]
  %v1337 = vld [vmem:[%s2 + $0x128] sm:$0xff]
  %v1338 = vld [vmem:[%s2 + $0x130] sm:$0xff]
  %v1339 = vld [vmem:[%s2 + $0x138] sm:$0xff]
  %v1340 = vld [vmem:[%s2 + $0x140] sm:$0xff]
  %v1341 = vld [vmem:[%s2 + $0x148] sm:$0xff]
  %v1342 = vld [vmem:[%s2 + $0x150] sm:$0xff]
  %v1343 = vld [vmem:[%s2 + $0x158] sm:$0xff]
  %v1344 = vld [vmem:[%s2 + $0x160] sm:$0xff]
  %v1345 = vld [vmem:[%s2 + $0x168] sm:$0xff]
  %v1346 = vld [vmem:[%s2 + $0x170] sm:$0xff]
  %v1347 = vld [vmem:[%s2 + $0x178] sm:$0xff]
  %v1348 = vld [vmem:[%s2 + $0x180] sm:$0xff]
  %v1349 = vld [vmem:[%s2 + $0x188] sm:$0xff]
  %v1350 = vld [vmem:[%s2 + $0x190] sm:$0xff]
  %v1351 = vld [vmem:[%s2 + $0x198] sm:$0xff]
  %v1352 = vld [vmem:[%s2 + $0x1a0] sm:$0xff]
  %v1353 = vld [vmem:[%s2 + $0x1a8] sm:$0xff]
  %v1354 = vld [vmem:[%s2 + $0x1b0] sm:$0xff]
  %v1355 = vld [vmem:[%s2 + $0x1b8] sm:$0xff]
  %v1356 = vld [vmem:[%s2 + $0x1c0] sm:$0xff]
  %v1357 = vld [vmem:[%s2 + $0x1c8] sm:$0xff]
  %v1358 = vld [vmem:[%s2 + $0x1d0] sm:$0xff]
  %v1359 = vld [vmem:[%s2 + $0x1d8] sm:$0xff]
  %v1360 = vld [vmem:[%s2 + $0x1e0] sm:$0xff]
  %v1361 = vld [vmem:[%s2 + $0x1e8] sm:$0xff]
  %v1362 = vld [vmem:[%s2 + $0x1f0] sm:$0xff]
  %v1363 = vld [vmem:[%s2 + $0x1f8] sm:$0xff]
  %1364 = vmatprep.subr.mxu0 %v1301
  %1365 = vmatpush1.msra.mxu0 %v1300
  %1366 = vmatprep.subr.mxu0 %v1305
  %1367 = vmatpush1.msra.mxu0 %v1304
  %1368 = vmatprep.subr.mxu0 %v1309
  %1369 = vmatpush1.msra.mxu0 %v1308
  %1370 = vmatprep.subr.mxu0 %v1313
  %1371 = vmatpush1.msra.mxu0 %v1312
  %1372 = vmatprep.subr.mxu0 %v1317
  %1373 = vmatpush1.msra.mxu0 %v1316
  %1374 = vmatprep.subr.mxu0 %v1321
  %1375 = vmatpush1.msra.mxu0 %v1320
  %1376 = vmatprep.subr.mxu0 %v1325
  %1377 = vmatpush1.msra.mxu0 %v1324
  %1378 = vmatprep.subr.mxu0 %v1329
  %1379 = vmatpush1.msra.mxu0 %v1328
  %1380 = vmatprep.subr.mxu0 %v1333
  %1381 = vmatpush1.msra.mxu0 %v1332
  %1382 = vmatprep.subr.mxu0 %v1337
  %1383 = vmatpush1.msra.mxu0 %v1336
  %1384 = vmatprep.subr.mxu0 %v1341
  %1385 = vmatpush1.msra.mxu0 %v1340
  %1386 = vmatprep.subr.mxu0 %v1345
  %1387 = vmatpush1.msra.mxu0 %v1344
  %1388 = vmatprep.subr.mxu0 %v1349
  %1389 = vmatpush1.msra.mxu0 %v1348
  %1390 = vmatprep.subr.mxu0 %v1353
  %1391 = vmatpush1.msra.mxu0 %v1352
  %1392 = vmatprep.subr.mxu0 %v1357
  %1393 = vmatpush1.msra.mxu0 %v1356
  %1394 = vmatprep.subr.mxu0 %v1361
  %1395 = vmatpush1.msra.mxu0 %v1360
  %1396 = vmatprep.subr.mxu0 0.0
  %1397 = vmatpush1.msra.mxu0 0.0
  %1398 = vmatprep.subr.mxu0 0.0
  %1399 = vmatpush1.msra.mxu0 0.0
  %1400 = vmatprep.subr.mxu0 0.0
  %1401 = vmatpush1.msra.mxu0 0.0
  %1402 = vmatprep.subr.mxu0 0.0
  %1403 = vmatpush1.msra.mxu0 0.0
  %1404 = vmatprep.subr.mxu0 0.0
  %1405 = vmatpush1.msra.mxu0 0.0
  %1406 = vmatprep.subr.mxu0 0.0
  %1407 = vmatpush1.msra.mxu0 0.0
  %1408 = vmatprep.subr.mxu0 0.0
  %1409 = vmatpush1.msra.mxu0 0.0
  %1410 = vmatprep.subr.mxu0 0.0
  %1411 = vmatpush1.msra.mxu0 0.0
  %1412 = vmatprep.subr.mxu0 0.0
  %1413 = vmatpush1.msra.mxu0 0.0
  %1414 = vmatprep.subr.mxu0 0.0
  %1415 = vmatpush1.msra.mxu0 0.0
  %1416 = vmatprep.subr.mxu0 0.0
  %1417 = vmatpush1.msra.mxu0 0.0
  %1418 = vmatprep.subr.mxu0 0.0
  %1419 = vmatpush1.msra.mxu0 0.0
  %1420 = vmatprep.subr.mxu0 0.0
  %1421 = vmatpush1.msra.mxu0 0.0
  %1422 = vmatprep.subr.mxu0 0.0
  %1423 = vmatpush1.msra.mxu0 0.0
  %1424 = vmatprep.subr.mxu0 0.0
  %1425 = vmatpush1.msra.mxu0 0.0
  %1426 = vmatprep.subr.mxu0 0.0
  %1427 = vmatpush1.msra.mxu0 0.0
  %1428 = vmatprep.mubr.f32.mxu0 0.0
  %1429 = vmatmul.mubr.f32.gmra.mrb[0].mxu0 %v1294
  %v1430 = vpop.f32.mrb[0].mxu0
  %v1431 = vadd.f32 0.0, %v1430
  %v1432 = vpop.f32.mrb[0].mxu0
  %v1433 = vadd.f32 0.0, %v1432
  %1434 = vdwg.mxu0
  %1435 = vmatprep.subr.mxu0 %v1303
  %1436 = vmatpush1.msra.mxu0 %v1302
  %1437 = vmatprep.subr.mxu0 %v1307
  %1438 = vmatpush1.msra.mxu0 %v1306
  %1439 = vmatprep.subr.mxu0 %v1311
  %1440 = vmatpush1.msra.mxu0 %v1310
  %1441 = vmatprep.subr.mxu0 %v1315
  %1442 = vmatpush1.msra.mxu0 %v1314
  %1443 = vmatprep.subr.mxu0 %v1319
  %1444 = vmatpush1.msra.mxu0 %v1318
  %1445 = vmatprep.subr.mxu0 %v1323
  %1446 = vmatpush1.msra.mxu0 %v1322
  %1447 = vmatprep.subr.mxu0 %v1327
  %1448 = vmatpush1.msra.mxu0 %v1326
  %1449 = vmatprep.subr.mxu0 %v1331
  %1450 = vmatpush1.msra.mxu0 %v1330
  %1451 = vmatprep.subr.mxu0 %v1335
  %1452 = vmatpush1.msra.mxu0 %v1334
  %1453 = vmatprep.subr.mxu0 %v1339
  %1454 = vmatpush1.msra.mxu0 %v1338
  %1455 = vmatprep.subr.mxu0 %v1343
  %1456 = vmatpush1.msra.mxu0 %v1342
  %1457 = vmatprep.subr.mxu0 %v1347
  %1458 = vmatpush1.msra.mxu0 %v1346
  %1459 = vmatprep.subr.mxu0 %v1351
  %1460 = vmatpush1.msra.mxu0 %v1350
  %1461 = vmatprep.subr.mxu0 %v1355
  %1462 = vmatpush1.msra.mxu0 %v1354
  %1463 = vmatprep.subr.mxu0 %v1359
  %1464 = vmatpush1.msra.mxu0 %v1358
  %1465 = vmatprep.subr.mxu0 %v1363
  %1466 = vmatpush1.msra.mxu0 %v1362
  %1467 = vmatprep.subr.mxu0 0.0
  %1468 = vmatpush1.msra.mxu0 0.0
  %1469 = vmatprep.subr.mxu0 0.0
  %1470 = vmatpush1.msra.mxu0 0.0
  %1471 = vmatprep.subr.mxu0 0.0
  %1472 = vmatpush1.msra.mxu0 0.0
  %1473 = vmatprep.subr.mxu0 0.0
  %1474 = vmatpush1.msra.mxu0 0.0
  %1475 = vmatprep.subr.mxu0 0.0
  %1476 = vmatpush1.msra.mxu0 0.0
  %1477 = vmatprep.subr.mxu0 0.0
  %1478 = vmatpush1.msra.mxu0 0.0
  %1479 = vmatprep.subr.mxu0 0.0
  %1480 = vmatpush1.msra.mxu0 0.0
  %1481 = vmatprep.subr.mxu0 0.0
  %1482 = vmatpush1.msra.mxu0 0.0
  %1483 = vmatprep.subr.mxu0 0.0
  %1484 = vmatpush1.msra.mxu0 0.0
  %1485 = vmatprep.subr.mxu0 0.0
  %1486 = vmatpush1.msra.mxu0 0.0
  %1487 = vmatprep.subr.mxu0 0.0
  %1488 = vmatpush1.msra.mxu0 0.0
  %1489 = vmatprep.subr.mxu0 0.0
  %1490 = vmatpush1.msra.mxu0 0.0
  %1491 = vmatprep.subr.mxu0 0.0
  %1492 = vmatpush1.msra.mxu0 0.0
  %1493 = vmatprep.subr.mxu0 0.0
  %1494 = vmatpush1.msra.mxu0 0.0
  %1495 = vmatprep.subr.mxu0 0.0
  %1496 = vmatpush1.msra.mxu0 0.0
  %1497 = vmatprep.subr.mxu0 0.0
  %1498 = vmatpush1.msra.mxu0 0.0
  %1499 = vmatprep.mubr.f32.mxu0 0.0
  %1500 = vmatmul.mubr.f32.gmra.mrb[0].mxu0 %v1294
  %v1501 = vpop.f32.mrb[0].mxu0
  %v1502 = vadd.f32 0.0, %v1501
  %v1503 = vpop.f32.mrb[0].mxu0
  %v1504 = vadd.f32 0.0, %v1503
  %1505 = vdwg.mxu0
  %v1506 = vadd.f32 %v1296, %v1431
  %v1507 = vadd.f32 %v1297, %v1433
  %v1508 = vadd.f32 %v1298, %v1502
  %v1509 = vadd.f32 %v1299, %v1504
  %v1510 = vxor.u32 %v1506, 2147483648
  %v1511 = vmul.f32 %v1510, 1.442695
  %v1512 = vpow.pop %v1511
  %v1513 = vadd.f32 %v1512, 1.0
  %v1514 = vrcp.pop %v1513
  %v1515 = vmul.f32 1.0, %v1514
  %v1516 = vxor.u32 %v1507, 2147483648
  %v1517 = vmul.f32 %v1516, 1.442695
  %v1518 = vpow.pop %v1517
  %v1519 = vadd.f32 %v1518, 1.0
  %v1520 = vrcp.pop %v1519
  %v1521 = vmul.f32 1.0, %v1520
  %v1522 = vtanh.pop %v1508
  %v1523 = vxor.u32 %v1509, 2147483648
  %v1524 = vmul.f32 %v1523, 1.442695
  %v1525 = vpow.pop %v1524
  %v1526 = vadd.f32 %v1525, 1.0
  %v1527 = vrcp.pop %v1526
  %v1528 = vmul.f32 1.0, %v1527
  %v1529 = vmul.f32 %v1521, %v1292
  %v1530 = vmul.f32 %v1515, %v1522
  %v1531 = vadd.f32 %v1529, %v1530
  %v1532 = vtanh.pop %v1531
  %v1533 = vmul.f32 %v1528, %v1532
  %1534 = vst [vmem:[#allocation3 + $0x20] sm:$0xff] %v1533
  %v1535 = vld [vmem:[#allocation2 + $0xa0] sm:$0xff]
  %v1536 = vld [vmem:[#allocation2 + $0xa8] sm:$0xff]
  %v1537 = vld [vmem:[#allocation2 + $0xb0] sm:$0xff]
  %v1538 = vld [vmem:[#allocation2 + $0xb8] sm:$0xff]
  %v1539 = vld [vmem:[%s2] sm:$0xff]
  %v1540 = vld [vmem:[%s2 + $0x8] sm:$0xff]
  %v1541 = vld [vmem:[%s2 + $0x10] sm:$0xff]
  %v1542 = vld [vmem:[%s2 + $0x18] sm:$0xff]
  %v1543 = vld [vmem:[%s2 + $0x20] sm:$0xff]
  %v1544 = vld [vmem:[%s2 + $0x28] sm:$0xff]
  %v1545 = vld [vmem:[%s2 + $0x30] sm:$0xff]
  %v1546 = vld [vmem:[%s2 + $0x38] sm:$0xff]
  %v1547 = vld [vmem:[%s2 + $0x40] sm:$0xff]
  %v1548 = vld [vmem:[%s2 + $0x48] sm:$0xff]
  %v1549 = vld [vmem:[%s2 + $0x50] sm:$0xff]
  %v1550 = vld [vmem:[%s2 + $0x58] sm:$0xff]
  %v1551 = vld [vmem:[%s2 + $0x60] sm:$0xff]
  %v1552 = vld [vmem:[%s2 + $0x68] sm:$0xff]
  %v1553 = vld [vmem:[%s2 + $0x70] sm:$0xff]
  %v1554 = vld [vmem:[%s2 + $0x78] sm:$0xff]
  %v1555 = vld [vmem:[%s2 + $0x80] sm:$0xff]
  %v1556 = vld [vmem:[%s2 + $0x88] sm:$0xff]
  %v1557 = vld [vmem:[%s2 + $0x90] sm:$0xff]
  %v1558 = vld [vmem:[%s2 + $0x98] sm:$0xff]
  %v1559 = vld [vmem:[%s2 + $0xa0] sm:$0xff]
  %v1560 = vld [vmem:[%s2 + $0xa8] sm:$0xff]
  %v1561 = vld [vmem:[%s2 + $0xb0] sm:$0xff]
  %v1562 = vld [vmem:[%s2 + $0xb8] sm:$0xff]
  %v1563 = vld [vmem:[%s2 + $0xc0] sm:$0xff]
  %v1564 = vld [vmem:[%s2 + $0xc8] sm:$0xff]
  %v1565 = vld [vmem:[%s2 + $0xd0] sm:$0xff]
  %v1566 = vld [vmem:[%s2 + $0xd8] sm:$0xff]
  %v1567 = vld [vmem:[%s2 + $0xe0] sm:$0xff]
  %v1568 = vld [vmem:[%s2 + $0xe8] sm:$0xff]
  %v1569 = vld [vmem:[%s2 + $0xf0] sm:$0xff]
  %v1570 = vld [vmem:[%s2 + $0xf8] sm:$0xff]
  %v1571 = vld [vmem:[%s2 + $0x100] sm:$0xff]
  %v1572 = vld [vmem:[%s2 + $0x108] sm:$0xff]
  %v1573 = vld [vmem:[%s2 + $0x110] sm:$0xff]
  %v1574 = vld [vmem:[%s2 + $0x118] sm:$0xff]
  %v1575 = vld [vmem:[%s2 + $0x120] sm:$0xff]
  %v1576 = vld [vmem:[%s2 + $0x128] sm:$0xff]
  %v1577 = vld [vmem:[%s2 + $0x130] sm:$0xff]
  %v1578 = vld [vmem:[%s2 + $0x138] sm:$0xff]
  %v1579 = vld [vmem:[%s2 + $0x140] sm:$0xff]
  %v1580 = vld [vmem:[%s2 + $0x148] sm:$0xff]
  %v1581 = vld [vmem:[%s2 + $0x150] sm:$0xff]
  %v1582 = vld [vmem:[%s2 + $0x158] sm:$0xff]
  %v1583 = vld [vmem:[%s2 + $0x160] sm:$0xff]
  %v1584 = vld [vmem:[%s2 + $0x168] sm:$0xff]
  %v1585 = vld [vmem:[%s2 + $0x170] sm:$0xff]
  %v1586 = vld [vmem:[%s2 + $0x178] sm:$0xff]
  %v1587 = vld [vmem:[%s2 + $0x180] sm:$0xff]
  %v1588 = vld [vmem:[%s2 + $0x188] sm:$0xff]
  %v1589 = vld [vmem:[%s2 + $0x190] sm:$0xff]
  %v1590 = vld [vmem:[%s2 + $0x198] sm:$0xff]
  %v1591 = vld [vmem:[%s2 + $0x1a0] sm:$0xff]
  %v1592 = vld [vmem:[%s2 + $0x1a8] sm:$0xff]
  %v1593 = vld [vmem:[%s2 + $0x1b0] sm:$0xff]
  %v1594 = vld [vmem:[%s2 + $0x1b8] sm:$0xff]
  %v1595 = vld [vmem:[%s2 + $0x1c0] sm:$0xff]
  %v1596 = vld [vmem:[%s2 + $0x1c8] sm:$0xff]
  %v1597 = vld [vmem:[%s2 + $0x1d0] sm:$0xff]
  %v1598 = vld [vmem:[%s2 + $0x1d8] sm:$0xff]
  %v1599 = vld [vmem:[%s2 + $0x1e0] sm:$0xff]
  %v1600 = vld [vmem:[%s2 + $0x1e8] sm:$0xff]
  %v1601 = vld [vmem:[%s2 + $0x1f0] sm:$0xff]
  %v1602 = vld [vmem:[%s2 + $0x1f8] sm:$0xff]
  %1603 = vmatprep.subr.mxu0 %v1540
  %1604 = vmatpush1.msra.mxu0 %v1539
  %1605 = vmatprep.subr.mxu0 %v1544
  %1606 = vmatpush1.msra.mxu0 %v1543
  %1607 = vmatprep.subr.mxu0 %v1548
  %1608 = vmatpush1.msra.mxu0 %v1547
  %1609 = vmatprep.subr.mxu0 %v1552
  %1610 = vmatpush1.msra.mxu0 %v1551
  %1611 = vmatprep.subr.mxu0 %v1556
  %1612 = vmatpush1.msra.mxu0 %v1555
  %1613 = vmatprep.subr.mxu0 %v1560
  %1614 = vmatpush1.msra.mxu0 %v1559
  %1615 = vmatprep.subr.mxu0 %v1564
  %1616 = vmatpush1.msra.mxu0 %v1563
  %1617 = vmatprep.subr.mxu0 %v1568
  %1618 = vmatpush1.msra.mxu0 %v1567
  %1619 = vmatprep.subr.mxu0 %v1572
  %1620 = vmatpush1.msra.mxu0 %v1571
  %1621 = vmatprep.subr.mxu0 %v1576
  %1622 = vmatpush1.msra.mxu0 %v1575
  %1623 = vmatprep.subr.mxu0 %v1580
  %1624 = vmatpush1.msra.mxu0 %v1579
  %1625 = vmatprep.subr.mxu0 %v1584
  %1626 = vmatpush1.msra.mxu0 %v1583
  %1627 = vmatprep.subr.mxu0 %v1588
  %1628 = vmatpush1.msra.mxu0 %v1587
  %1629 = vmatprep.subr.mxu0 %v1592
  %1630 = vmatpush1.msra.mxu0 %v1591
  %1631 = vmatprep.subr.mxu0 %v1596
  %1632 = vmatpush1.msra.mxu0 %v1595
  %1633 = vmatprep.subr.mxu0 %v1600
  %1634 = vmatpush1.msra.mxu0 %v1599
  %1635 = vmatprep.subr.mxu0 0.0
  %1636 = vmatpush1.msra.mxu0 0.0
  %1637 = vmatprep.subr.mxu0 0.0
  %1638 = vmatpush1.msra.mxu0 0.0
  %1639 = vmatprep.subr.mxu0 0.0
  %1640 = vmatpush1.msra.mxu0 0.0
  %1641 = vmatprep.subr.mxu0 0.0
  %1642 = vmatpush1.msra.mxu0 0.0
  %1643 = vmatprep.subr.mxu0 0.0
  %1644 = vmatpush1.msra.mxu0 0.0
  %1645 = vmatprep.subr.mxu0 0.0
  %1646 = vmatpush1.msra.mxu0 0.0
  %1647 = vmatprep.subr.mxu0 0.0
  %1648 = vmatpush1.msra.mxu0 0.0
  %1649 = vmatprep.subr.mxu0 0.0
  %1650 = vmatpush1.msra.mxu0 0.0
  %1651 = vmatprep.subr.mxu0 0.0
  %1652 = vmatpush1.msra.mxu0 0.0
  %1653 = vmatprep.subr.mxu0 0.0
  %1654 = vmatpush1.msra.mxu0 0.0
  %1655 = vmatprep.subr.mxu0 0.0
  %1656 = vmatpush1.msra.mxu0 0.0
  %1657 = vmatprep.subr.mxu0 0.0
  %1658 = vmatpush1.msra.mxu0 0.0
  %1659 = vmatprep.subr.mxu0 0.0
  %1660 = vmatpush1.msra.mxu0 0.0
  %1661 = vmatprep.subr.mxu0 0.0
  %1662 = vmatpush1.msra.mxu0 0.0
  %1663 = vmatprep.subr.mxu0 0.0
  %1664 = vmatpush1.msra.mxu0 0.0
  %1665 = vmatprep.subr.mxu0 0.0
  %1666 = vmatpush1.msra.mxu0 0.0
  %1667 = vmatprep.mubr.f32.mxu0 0.0
  %1668 = vmatmul.mubr.f32.gmra.mrb[0].mxu0 %v1533
  %v1669 = vpop.f32.mrb[0].mxu0
  %v1670 = vadd.f32 0.0, %v1669
  %v1671 = vpop.f32.mrb[0].mxu0
  %v1672 = vadd.f32 0.0, %v1671
  %1673 = vdwg.mxu0
  %1674 = vmatprep.subr.mxu0 %v1542
  %1675 = vmatpush1.msra.mxu0 %v1541
  %1676 = vmatprep.subr.mxu0 %v1546
  %1677 = vmatpush1.msra.mxu0 %v1545
  %1678 = vmatprep.subr.mxu0 %v1550
  %1679 = vmatpush1.msra.mxu0 %v1549
  %1680 = vmatprep.subr.mxu0 %v1554
  %1681 = vmatpush1.msra.mxu0 %v1553
  %1682 = vmatprep.subr.mxu0 %v1558
  %1683 = vmatpush1.msra.mxu0 %v1557
  %1684 = vmatprep.subr.mxu0 %v1562
  %1685 = vmatpush1.msra.mxu0 %v1561
  %1686 = vmatprep.subr.mxu0 %v1566
  %1687 = vmatpush1.msra.mxu0 %v1565
  %1688 = vmatprep.subr.mxu0 %v1570
  %1689 = vmatpush1.msra.mxu0 %v1569
  %1690 = vmatprep.subr.mxu0 %v1574
  %1691 = vmatpush1.msra.mxu0 %v1573
  %1692 = vmatprep.subr.mxu0 %v1578
  %1693 = vmatpush1.msra.mxu0 %v1577
  %1694 = vmatprep.subr.mxu0 %v1582
  %1695 = vmatpush1.msra.mxu0 %v1581
  %1696 = vmatprep.subr.mxu0 %v1586
  %1697 = vmatpush1.msra.mxu0 %v1585
  %1698 = vmatprep.subr.mxu0 %v1590
  %1699 = vmatpush1.msra.mxu0 %v1589
  %1700 = vmatprep.subr.mxu0 %v1594
  %1701 = vmatpush1.msra.mxu0 %v1593
  %1702 = vmatprep.subr.mxu0 %v1598
  %1703 = vmatpush1.msra.mxu0 %v1597
  %1704 = vmatprep.subr.mxu0 %v1602
  %1705 = vmatpush1.msra.mxu0 %v1601
  %1706 = vmatprep.subr.mxu0 0.0
  %1707 = vmatpush1.msra.mxu0 0.0
  %1708 = vmatprep.subr.mxu0 0.0
  %1709 = vmatpush1.msra.mxu0 0.0
  %1710 = vmatprep.subr.mxu0 0.0
  %1711 = vmatpush1.msra.mxu0 0.0
  %1712 = vmatprep.subr.mxu0 0.0
  %1713 = vmatpush1.msra.mxu0 0.0
  %1714 = vmatprep.subr.mxu0 0.0
  %1715 = vmatpush1.msra.mxu0 0.0
  %1716 = vmatprep.subr.mxu0 0.0
  %1717 = vmatpush1.msra.mxu0 0.0
  %1718 = vmatprep.subr.mxu0 0.0
  %1719 = vmatpush1.msra.mxu0 0.0
  %1720 = vmatprep.subr.mxu0 0.0
  %1721 = vmatpush1.msra.mxu0 0.0
  %1722 = vmatprep.subr.mxu0 0.0
  %1723 = vmatpush1.msra.mxu0 0.0
  %1724 = vmatprep.subr.mxu0 0.0
  %1725 = vmatpush1.msra.mxu0 0.0
  %1726 = vmatprep.subr.mxu0 0.0
  %1727 = vmatpush1.msra.mxu0 0.0
  %1728 = vmatprep.subr.mxu0 0.0
  %1729 = vmatpush1.msra.mxu0 0.0
  %1730 = vmatprep.subr.mxu0 0.0
  %1731 = vmatpush1.msra.mxu0 0.0
  %1732 = vmatprep.subr.mxu0 0.0
  %1733 = vmatpush1.msra.mxu0 0.0
  %1734 = vmatprep.subr.mxu0 0.0
  %1735 = vmatpush1.msra.mxu0 0.0
  %1736 = vmatprep.subr.mxu0 0.0
  %1737 = vmatpush1.msra.mxu0 0.0
  %1738 = vmatprep.mubr.f32.mxu0 0.0
  %1739 = vmatmul.mubr.f32.gmra.mrb[0].mxu0 %v1533
  %v1740 = vpop.f32.mrb[0].mxu0
  %v1741 = vadd.f32 0.0, %v1740
  %v1742 = vpop.f32.mrb[0].mxu0
  %v1743 = vadd.f32 0.0, %v1742
  %1744 = vdwg.mxu0
  %v1745 = vadd.f32 %v1535, %v1670
  %v1746 = vadd.f32 %v1536, %v1672
  %v1747 = vadd.f32 %v1537, %v1741
  %v1748 = vadd.f32 %v1538, %v1743
  %v1749 = vxor.u32 %v1745, 2147483648
  %v1750 = vmul.f32 %v1749, 1.442695
  %v1751 = vpow.pop %v1750
  %v1752 = vadd.f32 %v1751, 1.0
  %v1753 = vrcp.pop %v1752
  %v1754 = vmul.f32 1.0, %v1753
  %v1755 = vxor.u32 %v1746, 2147483648
  %v1756 = vmul.f32 %v1755, 1.442695
  %v1757 = vpow.pop %v1756
  %v1758 = vadd.f32 %v1757, 1.0
  %v1759 = vrcp.pop %v1758
  %v1760 = vmul.f32 1.0, %v1759
  %v1761 = vtanh.pop %v1747
  %v1762 = vxor.u32 %v1748, 2147483648
  %v1763 = vmul.f32 %v1762, 1.442695
  %v1764 = vpow.pop %v1763
  %v1765 = vadd.f32 %v1764, 1.0
  %v1766 = vrcp.pop %v1765
  %v1767 = vmul.f32 1.0, %v1766
  %v1768 = vmul.f32 %v1760, %v1531
  %v1769 = vmul.f32 %v1754, %v1761
  %v1770 = vadd.f32 %v1768, %v1769
  %v1771 = vtanh.pop %v1770
  %v1772 = vmul.f32 %v1767, %v1771
  %1773 = vst [vmem:[#allocation3 + $0x28] sm:$0xff] %v1772
  %v1774 = vld [vmem:[#allocation2 + $0xc0] sm:$0xff]
  %v1775 = vld [vmem:[#allocation2 + $0xc8] sm:$0xff]
  %v1776 = vld [vmem:[#allocation2 + $0xd0] sm:$0xff]
  %v1777 = vld [vmem:[#allocation2 + $0xd8] sm:$0xff]
  %v1778 = vld [vmem:[%s2] sm:$0xff]
  %v1779 = vld [vmem:[%s2 + $0x8] sm:$0xff]
  %v1780 = vld [vmem:[%s2 + $0x10] sm:$0xff]
  %v1781 = vld [vmem:[%s2 + $0x18] sm:$0xff]
  %v1782 = vld [vmem:[%s2 + $0x20] sm:$0xff]
  %v1783 = vld [vmem:[%s2 + $0x28] sm:$0xff]
  %v1784 = vld [vmem:[%s2 + $0x30] sm:$0xff]
  %v1785 = vld [vmem:[%s2 + $0x38] sm:$0xff]
  %v1786 = vld [vmem:[%s2 + $0x40] sm:$0xff]
  %v1787 = vld [vmem:[%s2 + $0x48] sm:$0xff]
  %v1788 = vld [vmem:[%s2 + $0x50] sm:$0xff]
  %v1789 = vld [vmem:[%s2 + $0x58] sm:$0xff]
  %v1790 = vld [vmem:[%s2 + $0x60] sm:$0xff]
  %v1791 = vld [vmem:[%s2 + $0x68] sm:$0xff]
  %v1792 = vld [vmem:[%s2 + $0x70] sm:$0xff]
  %v1793 = vld [vmem:[%s2 + $0x78] sm:$0xff]
  %v1794 = vld [vmem:[%s2 + $0x80] sm:$0xff]
  %v1795 = vld [vmem:[%s2 + $0x88] sm:$0xff]
  %v1796 = vld [vmem:[%s2 + $0x90] sm:$0xff]
  %v1797 = vld [vmem:[%s2 + $0x98] sm:$0xff]
  %v1798 = vld [vmem:[%s2 + $0xa0] sm:$0xff]
  %v1799 = vld [vmem:[%s2 + $0xa8] sm:$0xff]
  %v1800 = vld [vmem:[%s2 + $0xb0] sm:$0xff]
  %v1801 = vld [vmem:[%s2 + $0xb8] sm:$0xff]
  %v1802 = vld [vmem:[%s2 + $0xc0] sm:$0xff]
  %v1803 = vld [vmem:[%s2 + $0xc8] sm:$0xff]
  %v1804 = vld [vmem:[%s2 + $0xd0] sm:$0xff]
  %v1805 = vld [vmem:[%s2 + $0xd8] sm:$0xff]
  %v1806 = vld [vmem:[%s2 + $0xe0] sm:$0xff]
  %v1807 = vld [vmem:[%s2 + $0xe8] sm:$0xff]
  %v1808 = vld [vmem:[%s2 + $0xf0] sm:$0xff]
  %v1809 = vld [vmem:[%s2 + $0xf8] sm:$0xff]
  %v1810 = vld [vmem:[%s2 + $0x100] sm:$0xff]
  %v1811 = vld [vmem:[%s2 + $0x108] sm:$0xff]
  %v1812 = vld [vmem:[%s2 + $0x110] sm:$0xff]
  %v1813 = vld [vmem:[%s2 + $0x118] sm:$0xff]
  %v1814 = vld [vmem:[%s2 + $0x120] sm:$0xff]
  %v1815 = vld [vmem:[%s2 + $0x128] sm:$0xff]
  %v1816 = vld [vmem:[%s2 + $0x130] sm:$0xff]
  %v1817 = vld [vmem:[%s2 + $0x138] sm:$0xff]
  %v1818 = vld [vmem:[%s2 + $0x140] sm:$0xff]
  %v1819 = vld [vmem:[%s2 + $0x148] sm:$0xff]
  %v1820 = vld [vmem:[%s2 + $0x150] sm:$0xff]
  %v1821 = vld [vmem:[%s2 + $0x158] sm:$0xff]
  %v1822 = vld [vmem:[%s2 + $0x160] sm:$0xff]
  %v1823 = vld [vmem:[%s2 + $0x168] sm:$0xff]
  %v1824 = vld [vmem:[%s2 + $0x170] sm:$0xff]
  %v1825 = vld [vmem:[%s2 + $0x178] sm:$0xff]
  %v1826 = vld [vmem:[%s2 + $0x180] sm:$0xff]
  %v1827 = vld [vmem:[%s2 + $0x188] sm:$0xff]
  %v1828 = vld [vmem:[%s2 + $0x190] sm:$0xff]
  %v1829 = vld [vmem:[%s2 + $0x198] sm:$0xff]
  %v1830 = vld [vmem:[%s2 + $0x1a0] sm:$0xff]
  %v1831 = vld [vmem:[%s2 + $0x1a8] sm:$0xff]
  %v1832 = vld [vmem:[%s2 + $0x1b0] sm:$0xff]
  %v1833 = vld [vmem:[%s2 + $0x1b8] sm:$0xff]
  %v1834 = vld [vmem:[%s2 + $0x1c0] sm:$0xff]
  %v1835 = vld [vmem:[%s2 + $0x1c8] sm:$0xff]
  %v1836 = vld [vmem:[%s2 + $0x1d0] sm:$0xff]
  %v1837 = vld [vmem:[%s2 + $0x1d8] sm:$0xff]
  %v1838 = vld [vmem:[%s2 + $0x1e0] sm:$0xff]
  %v1839 = vld [vmem:[%s2 + $0x1e8] sm:$0xff]
  %v1840 = vld [vmem:[%s2 + $0x1f0] sm:$0xff]
  %v1841 = vld [vmem:[%s2 + $0x1f8] sm:$0xff]
  %1842 = vmatprep.subr.mxu0 %v1779
  %1843 = vmatpush1.msra.mxu0 %v1778
  %1844 = vmatprep.subr.mxu0 %v1783
  %1845 = vmatpush1.msra.mxu0 %v1782
  %1846 = vmatprep.subr.mxu0 %v1787
  %1847 = vmatpush1.msra.mxu0 %v1786
  %1848 = vmatprep.subr.mxu0 %v1791
  %1849 = vmatpush1.msra.mxu0 %v1790
  %1850 = vmatprep.subr.mxu0 %v1795
  %1851 = vmatpush1.msra.mxu0 %v1794
  %1852 = vmatprep.subr.mxu0 %v1799
  %1853 = vmatpush1.msra.mxu0 %v1798
  %1854 = vmatprep.subr.mxu0 %v1803
  %1855 = vmatpush1.msra.mxu0 %v1802
  %1856 = vmatprep.subr.mxu0 %v1807
  %1857 = vmatpush1.msra.mxu0 %v1806
  %1858 = vmatprep.subr.mxu0 %v1811
  %1859 = vmatpush1.msra.mxu0 %v1810
  %1860 = vmatprep.subr.mxu0 %v1815
  %1861 = vmatpush1.msra.mxu0 %v1814
  %1862 = vmatprep.subr.mxu0 %v1819
  %1863 = vmatpush1.msra.mxu0 %v1818
  %1864 = vmatprep.subr.mxu0 %v1823
  %1865 = vmatpush1.msra.mxu0 %v1822
  %1866 = vmatprep.subr.mxu0 %v1827
  %1867 = vmatpush1.msra.mxu0 %v1826
  %1868 = vmatprep.subr.mxu0 %v1831
  %1869 = vmatpush1.msra.mxu0 %v1830
  %1870 = vmatprep.subr.mxu0 %v1835
  %1871 = vmatpush1.msra.mxu0 %v1834
  %1872 = vmatprep.subr.mxu0 %v1839
  %1873 = vmatpush1.msra.mxu0 %v1838
  %1874 = vmatprep.subr.mxu0 0.0
  %1875 = vmatpush1.msra.mxu0 0.0
  %1876 = vmatprep.subr.mxu0 0.0
  %1877 = vmatpush1.msra.mxu0 0.0
  %1878 = vmatprep.subr.mxu0 0.0
  %1879 = vmatpush1.msra.mxu0 0.0
  %1880 = vmatprep.subr.mxu0 0.0
  %1881 = vmatpush1.msra.mxu0 0.0
  %1882 = vmatprep.subr.mxu0 0.0
  %1883 = vmatpush1.msra.mxu0 0.0
  %1884 = vmatprep.subr.mxu0 0.0
  %1885 = vmatpush1.msra.mxu0 0.0
  %1886 = vmatprep.subr.mxu0 0.0
  %1887 = vmatpush1.msra.mxu0 0.0
  %1888 = vmatprep.subr.mxu0 0.0
  %1889 = vmatpush1.msra.mxu0 0.0
  %1890 = vmatprep.subr.mxu0 0.0
  %1891 = vmatpush1.msra.mxu0 0.0
  %1892 = vmatprep.subr.mxu0 0.0
  %1893 = vmatpush1.msra.mxu0 0.0
  %1894 = vmatprep.subr.mxu0 0.0
  %1895 = vmatpush1.msra.mxu0 0.0
  %1896 = vmatprep.subr.mxu0 0.0
  %1897 = vmatpush1.msra.mxu0 0.0
  %1898 = vmatprep.subr.mxu0 0.0
  %1899 = vmatpush1.msra.mxu0 0.0
  %1900 = vmatprep.subr.mxu0 0.0
  %1901 = vmatpush1.msra.mxu0 0.0
  %1902 = vmatprep.subr.mxu0 0.0
  %1903 = vmatpush1.msra.mxu0 0.0
  %1904 = vmatprep.subr.mxu0 0.0
  %1905 = vmatpush1.msra.mxu0 0.0
  %1906 = vmatprep.mubr.f32.mxu0 0.0
  %1907 = vmatmul.mubr.f32.gmra.mrb[0].mxu0 %v1772
  %v1908 = vpop.f32.mrb[0].mxu0
  %v1909 = vadd.f32 0.0, %v1908
  %v1910 = vpop.f32.mrb[0].mxu0
  %v1911 = vadd.f32 0.0, %v1910
  %1912 = vdwg.mxu0
  %1913 = vmatprep.subr.mxu0 %v1781
  %1914 = vmatpush1.msra.mxu0 %v1780
  %1915 = vmatprep.subr.mxu0 %v1785
  %1916 = vmatpush1.msra.mxu0 %v1784
  %1917 = vmatprep.subr.mxu0 %v1789
  %1918 = vmatpush1.msra.mxu0 %v1788
  %1919 = vmatprep.subr.mxu0 %v1793
  %1920 = vmatpush1.msra.mxu0 %v1792
  %1921 = vmatprep.subr.mxu0 %v1797
  %1922 = vmatpush1.msra.mxu0 %v1796
  %1923 = vmatprep.subr.mxu0 %v1801
  %1924 = vmatpush1.msra.mxu0 %v1800
  %1925 = vmatprep.subr.mxu0 %v1805
  %1926 = vmatpush1.msra.mxu0 %v1804
  %1927 = vmatprep.subr.mxu0 %v1809
  %1928 = vmatpush1.msra.mxu0 %v1808
  %1929 = vmatprep.subr.mxu0 %v1813
  %1930 = vmatpush1.msra.mxu0 %v1812
  %1931 = vmatprep.subr.mxu0 %v1817
  %1932 = vmatpush1.msra.mxu0 %v1816
  %1933 = vmatprep.subr.mxu0 %v1821
  %1934 = vmatpush1.msra.mxu0 %v1820
  %1935 = vmatprep.subr.mxu0 %v1825
  %1936 = vmatpush1.msra.mxu0 %v1824
  %1937 = vmatprep.subr.mxu0 %v1829
  %1938 = vmatpush1.msra.mxu0 %v1828
  %1939 = vmatprep.subr.mxu0 %v1833
  %1940 = vmatpush1.msra.mxu0 %v1832
  %1941 = vmatprep.subr.mxu0 %v1837
  %1942 = vmatpush1.msra.mxu0 %v1836
  %1943 = vmatprep.subr.mxu0 %v1841
  %1944 = vmatpush1.msra.mxu0 %v1840
  %1945 = vmatprep.subr.mxu0 0.0
  %1946 = vmatpush1.msra.mxu0 0.0
  %1947 = vmatprep.subr.mxu0 0.0
  %1948 = vmatpush1.msra.mxu0 0.0
  %1949 = vmatprep.subr.mxu0 0.0
  %1950 = vmatpush1.msra.mxu0 0.0
  %1951 = vmatprep.subr.mxu0 0.0
  %1952 = vmatpush1.msra.mxu0 0.0
  %1953 = vmatprep.subr.mxu0 0.0
  %1954 = vmatpush1.msra.mxu0 0.0
  %1955 = vmatprep.subr.mxu0 0.0
  %1956 = vmatpush1.msra.mxu0 0.0
  %1957 = vmatprep.subr.mxu0 0.0
  %1958 = vmatpush1.msra.mxu0 0.0
  %1959 = vmatprep.subr.mxu0 0.0
  %1960 = vmatpush1.msra.mxu0 0.0
  %1961 = vmatprep.subr.mxu0 0.0
  %1962 = vmatpush1.msra.mxu0 0.0
  %1963 = vmatprep.subr.mxu0 0.0
  %1964 = vmatpush1.msra.mxu0 0.0
  %1965 = vmatprep.subr.mxu0 0.0
  %1966 = vmatpush1.msra.mxu0 0.0
  %1967 = vmatprep.subr.mxu0 0.0
  %1968 = vmatpush1.msra.mxu0 0.0
  %1969 = vmatprep.subr.mxu0 0.0
  %1970 = vmatpush1.msra.mxu0 0.0
  %1971 = vmatprep.subr.mxu0 0.0
  %1972 = vmatpush1.msra.mxu0 0.0
  %1973 = vmatprep.subr.mxu0 0.0
  %1974 = vmatpush1.msra.mxu0 0.0
  %1975 = vmatprep.subr.mxu0 0.0
  %1976 = vmatpush1.msra.mxu0 0.0
  %1977 = vmatprep.mubr.f32.mxu0 0.0
  %1978 = vmatmul.mubr.f32.gmra.mrb[0].mxu0 %v1772
  %v1979 = vpop.f32.mrb[0].mxu0
  %v1980 = vadd.f32 0.0, %v1979
  %v1981 = vpop.f32.mrb[0].mxu0
  %v1982 = vadd.f32 0.0, %v1981
  %1983 = vdwg.mxu0
  %v1984 = vadd.f32 %v1774, %v1909
  %v1985 = vadd.f32 %v1775, %v1911
  %v1986 = vadd.f32 %v1776, %v1980
  %v1987 = vadd.f32 %v1777, %v1982
  %v1988 = vxor.u32 %v1984, 2147483648
  %v1989 = vmul.f32 %v1988, 1.442695
  %v1990 = vpow.pop %v1989
  %v1991 = vadd.f32 %v1990, 1.0
  %v1992 = vrcp.pop %v1991
  %v1993 = vmul.f32 1.0, %v1992
  %v1994 = vxor.u32 %v1985, 2147483648
  %v1995 = vmul.f32 %v1994, 1.442695
  %v1996 = vpow.pop %v1995
  %v1997 = vadd.f32 %v1996, 1.0
  %v1998 = vrcp.pop %v1997
  %v1999 = vmul.f32 1.0, %v1998
  %v2000 = vtanh.pop %v1986
  %v2001 = vxor.u32 %v1987, 2147483648
  %v2002 = vmul.f32 %v2001, 1.442695
  %v2003 = vpow.pop %v2002
  %v2004 = vadd.f32 %v2003, 1.0
  %v2005 = vrcp.pop %v2004
  %v2006 = vmul.f32 1.0, %v2005
  %v2007 = vmul.f32 %v1999, %v1770
  %v2008 = vmul.f32 %v1993, %v2000
  %v2009 = vadd.f32 %v2007, %v2008
  %v2010 = vtanh.pop %v2009
  %v2011 = vmul.f32 %v2006, %v2010
  %2012 = vst [vmem:[#allocation3 + $0x30] sm:$0xff] %v2011
  %v2013 = vld [vmem:[#allocation2 + $0xe0] sm:$0xff]
  %v2014 = vld [vmem:[#allocation2 + $0xe8] sm:$0xff]
  %v2015 = vld [vmem:[#allocation2 + $0xf0] sm:$0xff]
  %v2016 = vld [vmem:[#allocation2 + $0xf8] sm:$0xff]
  %v2017 = vld [vmem:[%s2] sm:$0xff]
  %v2018 = vld [vmem:[%s2 + $0x8] sm:$0xff]
  %v2019 = vld [vmem:[%s2 + $0x10] sm:$0xff]
  %v2020 = vld [vmem:[%s2 + $0x18] sm:$0xff]
  %v2021 = vld [vmem:[%s2 + $0x20] sm:$0xff]
  %v2022 = vld [vmem:[%s2 + $0x28] sm:$0xff]
  %v2023 = vld [vmem:[%s2 + $0x30] sm:$0xff]
  %v2024 = vld [vmem:[%s2 + $0x38] sm:$0xff]
  %v2025 = vld [vmem:[%s2 + $0x40] sm:$0xff]
  %v2026 = vld [vmem:[%s2 + $0x48] sm:$0xff]
  %v2027 = vld [vmem:[%s2 + $0x50] sm:$0xff]
  %v2028 = vld [vmem:[%s2 + $0x58] sm:$0xff]
  %v2029 = vld [vmem:[%s2 + $0x60] sm:$0xff]
  %v2030 = vld [vmem:[%s2 + $0x68] sm:$0xff]
  %v2031 = vld [vmem:[%s2 + $0x70] sm:$0xff]
  %v2032 = vld [vmem:[%s2 + $0x78] sm:$0xff]
  %v2033 = vld [vmem:[%s2 + $0x80] sm:$0xff]
  %v2034 = vld [vmem:[%s2 + $0x88] sm:$0xff]
  %v2035 = vld [vmem:[%s2 + $0x90] sm:$0xff]
  %v2036 = vld [vmem:[%s2 + $0x98] sm:$0xff]
  %v2037 = vld [vmem:[%s2 + $0xa0] sm:$0xff]
  %v2038 = vld [vmem:[%s2 + $0xa8] sm:$0xff]
  %v2039 = vld [vmem:[%s2 + $0xb0] sm:$0xff]
  %v2040 = vld [vmem:[%s2 + $0xb8] sm:$0xff]
  %v2041 = vld [vmem:[%s2 + $0xc0] sm:$0xff]
  %v2042 = vld [vmem:[%s2 + $0xc8] sm:$0xff]
  %v2043 = vld [vmem:[%s2 + $0xd0] sm:$0xff]
  %v2044 = vld [vmem:[%s2 + $0xd8] sm:$0xff]
  %v2045 = vld [vmem:[%s2 + $0xe0] sm:$0xff]
  %v2046 = vld [vmem:[%s2 + $0xe8] sm:$0xff]
  %v2047 = vld [vmem:[%s2 + $0xf0] sm:$0xff]
  %v2048 = vld [vmem:[%s2 + $0xf8] sm:$0xff]
  %v2049 = vld [vmem:[%s2 + $0x100] sm:$0xff]
  %v2050 = vld [vmem:[%s2 + $0x108] sm:$0xff]
  %v2051 = vld [vmem:[%s2 + $0x110] sm:$0xff]
  %v2052 = vld [vmem:[%s2 + $0x118] sm:$0xff]
  %v2053 = vld [vmem:[%s2 + $0x120] sm:$0xff]
  %v2054 = vld [vmem:[%s2 + $0x128] sm:$0xff]
  %v2055 = vld [vmem:[%s2 + $0x130] sm:$0xff]
  %v2056 = vld [vmem:[%s2 + $0x138] sm:$0xff]
  %v2057 = vld [vmem:[%s2 + $0x140] sm:$0xff]
  %v2058 = vld [vmem:[%s2 + $0x148] sm:$0xff]
  %v2059 = vld [vmem:[%s2 + $0x150] sm:$0xff]
  %v2060 = vld [vmem:[%s2 + $0x158] sm:$0xff]
  %v2061 = vld [vmem:[%s2 + $0x160] sm:$0xff]
  %v2062 = vld [vmem:[%s2 + $0x168] sm:$0xff]
  %v2063 = vld [vmem:[%s2 + $0x170] sm:$0xff]
  %v2064 = vld [vmem:[%s2 + $0x178] sm:$0xff]
  %v2065 = vld [vmem:[%s2 + $0x180] sm:$0xff]
  %v2066 = vld [vmem:[%s2 + $0x188] sm:$0xff]
  %v2067 = vld [vmem:[%s2 + $0x190] sm:$0xff]
  %v2068 = vld [vmem:[%s2 + $0x198] sm:$0xff]
  %v2069 = vld [vmem:[%s2 + $0x1a0] sm:$0xff]
  %v2070 = vld [vmem:[%s2 + $0x1a8] sm:$0xff]
  %v2071 = vld [vmem:[%s2 + $0x1b0] sm:$0xff]
  %v2072 = vld [vmem:[%s2 + $0x1b8] sm:$0xff]
  %v2073 = vld [vmem:[%s2 + $0x1c0] sm:$0xff]
  %v2074 = vld [vmem:[%s2 + $0x1c8] sm:$0xff]
  %v2075 = vld [vmem:[%s2 + $0x1d0] sm:$0xff]
  %v2076 = vld [vmem:[%s2 + $0x1d8] sm:$0xff]
  %v2077 = vld [vmem:[%s2 + $0x1e0] sm:$0xff]
  %v2078 = vld [vmem:[%s2 + $0x1e8] sm:$0xff]
  %v2079 = vld [vmem:[%s2 + $0x1f0] sm:$0xff]
  %v2080 = vld [vmem:[%s2 + $0x1f8] sm:$0xff]
  %2081 = vmatprep.subr.mxu0 %v2018
  %2082 = vmatpush1.msra.mxu0 %v2017
  %2083 = vmatprep.subr.mxu0 %v2022
  %2084 = vmatpush1.msra.mxu0 %v2021
  %2085 = vmatprep.subr.mxu0 %v2026
  %2086 = vmatpush1.msra.mxu0 %v2025
  %2087 = vmatprep.subr.mxu0 %v2030
  %2088 = vmatpush1.msra.mxu0 %v2029
  %2089 = vmatprep.subr.mxu0 %v2034
  %2090 = vmatpush1.msra.mxu0 %v2033
  %2091 = vmatprep.subr.mxu0 %v2038
  %2092 = vmatpush1.msra.mxu0 %v2037
  %2093 = vmatprep.subr.mxu0 %v2042
  %2094 = vmatpush1.msra.mxu0 %v2041
  %2095 = vmatprep.subr.mxu0 %v2046
  %2096 = vmatpush1.msra.mxu0 %v2045
  %2097 = vmatprep.subr.mxu0 %v2050
  %2098 = vmatpush1.msra.mxu0 %v2049
  %2099 = vmatprep.subr.mxu0 %v2054
  %2100 = vmatpush1.msra.mxu0 %v2053
  %2101 = vmatprep.subr.mxu0 %v2058
  %2102 = vmatpush1.msra.mxu0 %v2057
  %2103 = vmatprep.subr.mxu0 %v2062
  %2104 = vmatpush1.msra.mxu0 %v2061
  %2105 = vmatprep.subr.mxu0 %v2066
  %2106 = vmatpush1.msra.mxu0 %v2065
  %2107 = vmatprep.subr.mxu0 %v2070
  %2108 = vmatpush1.msra.mxu0 %v2069
  %2109 = vmatprep.subr.mxu0 %v2074
  %2110 = vmatpush1.msra.mxu0 %v2073
  %2111 = vmatprep.subr.mxu0 %v2078
  %2112 = vmatpush1.msra.mxu0 %v2077
  %2113 = vmatprep.subr.mxu0 0.0
  %2114 = vmatpush1.msra.mxu0 0.0
  %2115 = vmatprep.subr.mxu0 0.0
  %2116 = vmatpush1.msra.mxu0 0.0
  %2117 = vmatprep.subr.mxu0 0.0
  %2118 = vmatpush1.msra.mxu0 0.0
  %2119 = vmatprep.subr.mxu0 0.0
  %2120 = vmatpush1.msra.mxu0 0.0
  %2121 = vmatprep.subr.mxu0 0.0
  %2122 = vmatpush1.msra.mxu0 0.0
  %2123 = vmatprep.subr.mxu0 0.0
  %2124 = vmatpush1.msra.mxu0 0.0
  %2125 = vmatprep.subr.mxu0 0.0
  %2126 = vmatpush1.msra.mxu0 0.0
  %2127 = vmatprep.subr.mxu0 0.0
  %2128 = vmatpush1.msra.mxu0 0.0
  %2129 = vmatprep.subr.mxu0 0.0
  %2130 = vmatpush1.msra.mxu0 0.0
  %2131 = vmatprep.subr.mxu0 0.0
  %2132 = vmatpush1.msra.mxu0 0.0
  %2133 = vmatprep.subr.mxu0 0.0
  %2134 = vmatpush1.msra.mxu0 0.0
  %2135 = vmatprep.subr.mxu0 0.0
  %2136 = vmatpush1.msra.mxu0 0.0
  %2137 = vmatprep.subr.mxu0 0.0
  %2138 = vmatpush1.msra.mxu0 0.0
  %2139 = vmatprep.subr.mxu0 0.0
  %2140 = vmatpush1.msra.mxu0 0.0
  %2141 = vmatprep.subr.mxu0 0.0
  %2142 = vmatpush1.msra.mxu0 0.0
  %2143 = vmatprep.subr.mxu0 0.0
  %2144 = vmatpush1.msra.mxu0 0.0
  %2145 = vmatprep.mubr.f32.mxu0 0.0
  %2146 = vmatmul.mubr.f32.gmra.mrb[0].mxu0 %v2011
  %v2147 = vpop.f32.mrb[0].mxu0
  %v2148 = vadd.f32 0.0, %v2147
  %v2149 = vpop.f32.mrb[0].mxu0
  %v2150 = vadd.f32 0.0, %v2149
  %2151 = vdwg.mxu0
  %2152 = vmatprep.subr.mxu0 %v2020
  %2153 = vmatpush1.msra.mxu0 %v2019
  %2154 = vmatprep.subr.mxu0 %v2024
  %2155 = vmatpush1.msra.mxu0 %v2023
  %2156 = vmatprep.subr.mxu0 %v2028
  %2157 = vmatpush1.msra.mxu0 %v2027
  %2158 = vmatprep.subr.mxu0 %v2032
  %2159 = vmatpush1.msra.mxu0 %v2031
  %2160 = vmatprep.subr.mxu0 %v2036
  %2161 = vmatpush1.msra.mxu0 %v2035
  %2162 = vmatprep.subr.mxu0 %v2040
  %2163 = vmatpush1.msra.mxu0 %v2039
  %2164 = vmatprep.subr.mxu0 %v2044
  %2165 = vmatpush1.msra.mxu0 %v2043
  %2166 = vmatprep.subr.mxu0 %v2048
  %2167 = vmatpush1.msra.mxu0 %v2047
  %2168 = vmatprep.subr.mxu0 %v2052
  %2169 = vmatpush1.msra.mxu0 %v2051
  %2170 = vmatprep.subr.mxu0 %v2056
  %2171 = vmatpush1.msra.mxu0 %v2055
  %2172 = vmatprep.subr.mxu0 %v2060
  %2173 = vmatpush1.msra.mxu0 %v2059
  %2174 = vmatprep.subr.mxu0 %v2064
  %2175 = vmatpush1.msra.mxu0 %v2063
  %2176 = vmatprep.subr.mxu0 %v2068
  %2177 = vmatpush1.msra.mxu0 %v2067
  %2178 = vmatprep.subr.mxu0 %v2072
  %2179 = vmatpush1.msra.mxu0 %v2071
  %2180 = vmatprep.subr.mxu0 %v2076
  %2181 = vmatpush1.msra.mxu0 %v2075
  %2182 = vmatprep.subr.mxu0 %v2080
  %2183 = vmatpush1.msra.mxu0 %v2079
  %2184 = vmatprep.subr.mxu0 0.0
  %2185 = vmatpush1.msra.mxu0 0.0
  %2186 = vmatprep.subr.mxu0 0.0
  %2187 = vmatpush1.msra.mxu0 0.0
  %2188 = vmatprep.subr.mxu0 0.0
  %2189 = vmatpush1.msra.mxu0 0.0
  %2190 = vmatprep.subr.mxu0 0.0
  %2191 = vmatpush1.msra.mxu0 0.0
  %2192 = vmatprep.subr.mxu0 0.0
  %2193 = vmatpush1.msra.mxu0 0.0
  %2194 = vmatprep.subr.mxu0 0.0
  %2195 = vmatpush1.msra.mxu0 0.0
  %2196 = vmatprep.subr.mxu0 0.0
  %2197 = vmatpush1.msra.mxu0 0.0
  %2198 = vmatprep.subr.mxu0 0.0
  %2199 = vmatpush1.msra.mxu0 0.0
  %2200 = vmatprep.subr.mxu0 0.0
  %2201 = vmatpush1.msra.mxu0 0.0
  %2202 = vmatprep.subr.mxu0 0.0
  %2203 = vmatpush1.msra.mxu0 0.0
  %2204 = vmatprep.subr.mxu0 0.0
  %2205 = vmatpush1.msra.mxu0 0.0
  %2206 = vmatprep.subr.mxu0 0.0
  %2207 = vmatpush1.msra.mxu0 0.0
  %2208 = vmatprep.subr.mxu0 0.0
  %2209 = vmatpush1.msra.mxu0 0.0
  %2210 = vmatprep.subr.mxu0 0.0
  %2211 = vmatpush1.msra.mxu0 0.0
  %2212 = vmatprep.subr.mxu0 0.0
  %2213 = vmatpush1.msra.mxu0 0.0
  %2214 = vmatprep.subr.mxu0 0.0
  %2215 = vmatpush1.msra.mxu0 0.0
  %2216 = vmatprep.mubr.f32.mxu0 0.0
  %2217 = vmatmul.mubr.f32.gmra.mrb[0].mxu0 %v2011
  %v2218 = vpop.f32.mrb[0].mxu0
  %v2219 = vadd.f32 0.0, %v2218
  %v2220 = vpop.f32.mrb[0].mxu0
  %v2221 = vadd.f32 0.0, %v2220
  %2222 = vdwg.mxu0
  %v2223 = vadd.f32 %v2013, %v2148
  %v2224 = vadd.f32 %v2014, %v2150
  %v2225 = vadd.f32 %v2015, %v2219
  %v2226 = vadd.f32 %v2016, %v2221
  %v2227 = vxor.u32 %v2223, 2147483648
  %v2228 = vmul.f32 %v2227, 1.442695
  %v2229 = vpow.pop %v2228
  %v2230 = vadd.f32 %v2229, 1.0
  %v2231 = vrcp.pop %v2230
  %v2232 = vmul.f32 1.0, %v2231
  %v2233 = vxor.u32 %v2224, 2147483648
  %v2234 = vmul.f32 %v2233, 1.442695
  %v2235 = vpow.pop %v2234
  %v2236 = vadd.f32 %v2235, 1.0
  %v2237 = vrcp.pop %v2236
  %v2238 = vmul.f32 1.0, %v2237
  %v2239 = vtanh.pop %v2225
  %v2240 = vxor.u32 %v2226, 2147483648
  %v2241 = vmul.f32 %v2240, 1.442695
  %v2242 = vpow.pop %v2241
  %v2243 = vadd.f32 %v2242, 1.0
  %v2244 = vrcp.pop %v2243
  %v2245 = vmul.f32 1.0, %v2244
  %v2246 = vmul.f32 %v2238, %v2009
  %v2247 = vmul.f32 %v2232, %v2239
  %v2248 = vadd.f32 %v2246, %v2247
  %v2249 = vtanh.pop %v2248
  %v2250 = vmul.f32 %v2245, %v2249
  %2251 = vst [vmem:[#allocation3 + $0x38] sm:$0xff] %v2250
  %v2252 = vld [vmem:[#allocation3] sm:$0xff]
  %v2253 = vld [vmem:[#allocation3 + $0x8] sm:$0xff]
  %v2254 = vld [vmem:[#allocation3 + $0x10] sm:$0xff]
  %v2255 = vld [vmem:[#allocation3 + $0x18] sm:$0xff]
  %v2256 = vld [vmem:[#allocation3 + $0x20] sm:$0xff]
  %v2257 = vld [vmem:[#allocation3 + $0x28] sm:$0xff]
  %v2258 = vld [vmem:[#allocation3 + $0x30] sm:$0xff]
  %v2259 = vld [vmem:[#allocation3 + $0x38] sm:$0xff]
  %v2260 = vld [vmem:[%s4] sm:$0xff]
  %v2261 = vld [vmem:[%s4 + $0x8] sm:$0xff]
  %v2262 = vld [vmem:[%s4 + $0x10] sm:$0xff]
  %v2263 = vld [vmem:[%s4 + $0x18] sm:$0xff]
  %v2264 = vld [vmem:[%s4 + $0x20] sm:$0xff]
  %v2265 = vld [vmem:[%s4 + $0x28] sm:$0xff]
  %v2266 = vld [vmem:[%s4 + $0x30] sm:$0xff]
  %v2267 = vld [vmem:[%s4 + $0x38] sm:$0xff]
  %v2268 = vld [vmem:[%s4 + $0x40] sm:$0xff]
  %v2269 = vld [vmem:[%s4 + $0x48] sm:$0xff]
  %v2270 = vld [vmem:[%s4 + $0x50] sm:$0xff]
  %v2271 = vld [vmem:[%s4 + $0x58] sm:$0xff]
  %v2272 = vld [vmem:[%s4 + $0x60] sm:$0xff]
  %v2273 = vld [vmem:[%s4 + $0x68] sm:$0xff]
  %v2274 = vld [vmem:[%s4 + $0x70] sm:$0xff]
  %v2275 = vld [vmem:[%s4 + $0x78] sm:$0xff]
  %v2276 = vld [vmem:[%s5] sm:$0x1]
  %v2278 = vlaneseq
  %v2279 = vshrl.u32 %v2278, 7
  %v2280 = vsub.s32 0, %v2279
  %v2281 = vrot.slane %v2276, %v2280
  %2283 = vmatprep.subr.mxu0 0.0
  %2284 = vmatpush1.msra.mxu0 %v2260
  %2285 = vmatprep.subr.mxu0 0.0
  %2286 = vmatpush1.msra.mxu0 %v2261
  %2287 = vmatprep.subr.mxu0 0.0
  %2288 = vmatpush1.msra.mxu0 %v2262
  %2289 = vmatprep.subr.mxu0 0.0
  %2290 = vmatpush1.msra.mxu0 %v2263
  %2291 = vmatprep.subr.mxu0 0.0
  %2292 = vmatpush1.msra.mxu0 %v2264
  %2293 = vmatprep.subr.mxu0 0.0
  %2294 = vmatpush1.msra.mxu0 %v2265
  %2295 = vmatprep.subr.mxu0 0.0
  %2296 = vmatpush1.msra.mxu0 %v2266
  %2297 = vmatprep.subr.mxu0 0.0
  %2298 = vmatpush1.msra.mxu0 %v2267
  %2299 = vmatprep.subr.mxu0 0.0
  %2300 = vmatpush1.msra.mxu0 %v2268
  %2301 = vmatprep.subr.mxu0 0.0
  %2302 = vmatpush1.msra.mxu0 %v2269
  %2303 = vmatprep.subr.mxu0 0.0
  %2304 = vmatpush1.msra.mxu0 %v2270
  %2305 = vmatprep.subr.mxu0 0.0
  %2306 = vmatpush1.msra.mxu0 %v2271
  %2307 = vmatprep.subr.mxu0 0.0
  %2308 = vmatpush1.msra.mxu0 %v2272
  %2309 = vmatprep.subr.mxu0 0.0
  %2310 = vmatpush1.msra.mxu0 %v2273
  %2311 = vmatprep.subr.mxu0 0.0
  %2312 = vmatpush1.msra.mxu0 %v2274
  %2313 = vmatprep.subr.mxu0 0.0
  %2314 = vmatpush1.msra.mxu0 %v2275
  %2315 = vmatprep.subr.mxu0 0.0
  %2316 = vmatpush1.msra.mxu0 0.0
  %2317 = vmatprep.subr.mxu0 0.0
  %2318 = vmatpush1.msra.mxu0 0.0
  %2319 = vmatprep.subr.mxu0 0.0
  %2320 = vmatpush1.msra.mxu0 0.0
  %2321 = vmatprep.subr.mxu0 0.0
  %2322 = vmatpush1.msra.mxu0 0.0
  %2323 = vmatprep.subr.mxu0 0.0
  %2324 = vmatpush1.msra.mxu0 0.0
  %2325 = vmatprep.subr.mxu0 0.0
  %2326 = vmatpush1.msra.mxu0 0.0
  %2327 = vmatprep.subr.mxu0 0.0
  %2328 = vmatpush1.msra.mxu0 0.0
  %2329 = vmatprep.subr.mxu0 0.0
  %2330 = vmatpush1.msra.mxu0 0.0
  %2331 = vmatprep.subr.mxu0 0.0
  %2332 = vmatpush1.msra.mxu0 0.0
  %2333 = vmatprep.subr.mxu0 0.0
  %2334 = vmatpush1.msra.mxu0 0.0
  %2335 = vmatprep.subr.mxu0 0.0
  %2336 = vmatpush1.msra.mxu0 0.0
  %2337 = vmatprep.subr.mxu0 0.0
  %2338 = vmatpush1.msra.mxu0 0.0
  %2339 = vmatprep.subr.mxu0 0.0
  %2340 = vmatpush1.msra.mxu0 0.0
  %2341 = vmatprep.subr.mxu0 0.0
  %2342 = vmatpush1.msra.mxu0 0.0
  %2343 = vmatprep.subr.mxu0 0.0
  %2344 = vmatpush1.msra.mxu0 0.0
  %2345 = vmatprep.subr.mxu0 0.0
  %2346 = vmatpush1.msra.mxu0 0.0
  %2347 = vmatprep.mubr.f32.mxu0 0.0
  %2348 = vmatmul.mubr.f32.gmra.mrb[0].mxu0 %v2252
  %v2349 = vpop.f32.mrb[0].mxu0
  %v2350 = vadd.f32 %v2281, %v2349
  %v2351 = vpop.f32.mrb[0].mxu0
  %2352 = vmatprep.mubr.f32.mxu0 0.0
  %2353 = vmatmul.mubr.f32.gmra.mrb[0].mxu0 %v2253
  %v2354 = vpop.f32.mrb[0].mxu0
  %v2355 = vadd.f32 %v2281, %v2354
  %v2356 = vpop.f32.mrb[0].mxu0
  %2357 = vmatprep.mubr.f32.mxu0 0.0
  %2358 = vmatmul.mubr.f32.gmra.mrb[0].mxu0 %v2254
  %v2359 = vpop.f32.mrb[0].mxu0
  %v2360 = vadd.f32 %v2281, %v2359
  %v2361 = vpop.f32.mrb[0].mxu0
  %2362 = vmatprep.mubr.f32.mxu0 0.0
  %2363 = vmatmul.mubr.f32.gmra.mrb[0].mxu0 %v2255
  %v2364 = vpop.f32.mrb[0].mxu0
  %v2365 = vadd.f32 %v2281, %v2364
  %v2366 = vpop.f32.mrb[0].mxu0
  %2367 = vmatprep.mubr.f32.mxu0 0.0
  %2368 = vmatmul.mubr.f32.gmra.mrb[0].mxu0 %v2256
  %v2369 = vpop.f32.mrb[0].mxu0
  %v2370 = vadd.f32 %v2281, %v2369
  %v2371 = vpop.f32.mrb[0].mxu0
  %2372 = vmatprep.mubr.f32.mxu0 0.0
  %2373 = vmatmul.mubr.f32.gmra.mrb[0].mxu0 %v2257
  %v2374 = vpop.f32.mrb[0].mxu0
  %v2375 = vadd.f32 %v2281, %v2374
  %v2376 = vpop.f32.mrb[0].mxu0
  %2377 = vmatprep.mubr.f32.mxu0 0.0
  %2378 = vmatmul.mubr.f32.gmra.mrb[0].mxu0 %v2258
  %v2379 = vpop.f32.mrb[0].mxu0
  %v2380 = vadd.f32 %v2281, %v2379
  %v2381 = vpop.f32.mrb[0].mxu0
  %2382 = vmatprep.mubr.f32.mxu0 0.0
  %2383 = vmatmul.mubr.f32.gmra.mrb[0].mxu0 %v2259
  %v2384 = vpop.f32.mrb[0].mxu0
  %v2385 = vadd.f32 %v2281, %v2384
  %v2386 = vpop.f32.mrb[0].mxu0
  %2387 = vdwg.mxu0
  %2388 = vst [vmem:[%s6] sm:$0xff] %v2350
  %2389 = vst [vmem:[%s6 + $0x8] sm:$0xff] %v2355
  %2390 = vst [vmem:[%s6 + $0x10] sm:$0xff] %v2360
  %2391 = vst [vmem:[%s6 + $0x18] sm:$0xff] %v2365
  %2392 = vst [vmem:[%s6 + $0x20] sm:$0xff] %v2370
  %2393 = vst [vmem:[%s6 + $0x28] sm:$0xff] %v2375
  %2394 = vst [vmem:[%s6 + $0x30] sm:$0xff] %v2380
  %2395 = vst [vmem:[%s6 + $0x38] sm:$0xff] %v2385
  // Predicated region
  $region26: #{air_model_forward.1} parent=0 // pred_check
    _
  $region27: #{air_model_forward.1} parent=0 // pred_check_branch
    %2397 = sbr.rel (0) target = $region29
  $region28: #{air_model_forward.1} parent=0 // pred_region
    _
  $region29: #{air_model_forward.1} parent=0 // pred_fallthru
    _
  // Predicated region
  $region30: #{air_model_forward.1} parent=0 // pred_check
    _
  $region31: #{air_model_forward.1} parent=0 // pred_check_branch
    %2399 = sbr.rel (0) target = $region33
  $region32: #{air_model_forward.1} parent=0 // pred_region
    _
  $region33: #{air_model_forward.1} parent=0 // pred_fallthru
    _

</llo_original>
